<compile_context>
chip_gen: v6e
topology: v6e:2x2x1
jax: 0.10.0
libtpu: 0.0.40
codegen_flags: <defaults>
</compile_context>

<pallas_src>
import functools
import math

import jax
import jax.numpy as jnp
from jax import lax
from jax.experimental import pallas as pl
from jax.experimental.pallas import tpu as pltpu


# ----------------------------------------------------------------------------
# Pallas kernel: one EncoderLayer for one batch tile per grid step.
# grid = (num_batch_tiles, n_layers); the layer axis is innermost ("arbitrary")
# and the activation x stays resident in VMEM (carried in out_ref).
# ----------------------------------------------------------------------------
def _encoder_stack_kernel(
    x_ref, mask_ref,
    wqkv_ref, bqkv_ref, wo_ref, bo_ref, ln1g_ref, ln1b_ref,
    w1_ref, b1_ref, w2_ref, b2_ref, ln2g_ref, ln2b_ref,
    out_ref, attn_ref,
    *, n_heads,
):
    layer = pl.program_id(1)
    n_layers = pl.num_programs(1)

    bt, S, D = out_ref.shape
    H = n_heads
    hd = D // H
    M = bt * S
    f32 = jnp.float32
    bf16 = jnp.bfloat16
    inv_scale = f32(1.0 / math.sqrt(hd))

    # Layer 0: seed the VMEM-resident carry with the embedded input.
    @pl.when(layer == 0)
    def _():
        out_ref[...] = x_ref[...]

    x2 = out_ref[...].reshape(M, D)          # [bt*S, D] f32 — rows folded for the MXU

    def linear(v, w_ref, b_ref):
        # bf16 MXU matmul, f32 accumulate + bias.
        return jnp.dot(v.astype(bf16), w_ref[0],
                       preferred_element_type=f32) + b_ref[0]

    # Fused QKV projection: one [M, D] x [D, 3D] matmul.
    qkv = linear(x2, wqkv_ref, bqkv_ref)     # [M, 3D] f32

    # Single bf16 cast per operand; 1/sqrt(hd) folded into Q here
    # (D-wide scale instead of an S^2-wide energy scale).
    qb = (qkv[:, :D] * inv_scale).astype(bf16)       # [M, D]
    kb = qkv[:, D:2 * D].astype(bf16)
    vb = qkv[:, 2 * D:].astype(bf16)

    # One head relayout per operand: H lane slices stacked on a NEW MAJOR axis,
    # giving [H, M, hd] so all heads share one batched MXU matmul.
    q3 = jnp.stack([qb[:, h * hd:(h + 1) * hd] for h in range(H)], axis=0)
    k3 = jnp.stack([kb[:, h * hd:(h + 1) * hd] for h in range(H)], axis=0)
    v3 = jnp.stack([vb[:, h * hd:(h + 1) * hd] for h in range(H)], axis=0)

    # Additive mask, computed once per grid step (no per-head broadcast/select).
    mask_add = jnp.where(mask_ref[...] > 0.5, f32(0.0), f32(-1e10))   # [bt, 1, S]

    ctx_rows = []
    for b in range(bt):                       # small static loop over batch rows
        lo, hi = b * S, (b + 1) * S

        # energies for ALL heads in one batched matmul (documented 'bqd,bkd->bqk')
        e = jnp.einsum('hqd,hkd->hqk', q3[:, lo:hi, :], k3[:, lo:hi, :],
                       preferred_element_type=f32)            # [H, S, S]
        e = e + mask_add[b]                                   # bcast over h, q

        m = jnp.max(e, axis=-1, keepdims=True)
        p = jnp.exp(e - m)
        p = p * pl.reciprocal(jnp.sum(p, axis=-1, keepdims=True), approx=False)

        # Attention map goes to HBM only for the last layer; store it right where
        # it is produced so p does not stay live past this iteration.
        @pl.when(layer == n_layers - 1)
        def _(p=p, b=b):
            attn_ref[b] = p.astype(attn_ref.dtype)

        # PV for ALL heads in one batched matmul (documented 'bqk,bkd->bqd')
        ctx3 = jnp.einsum('hqk,hkd->hqd', p.astype(bf16), v3[:, lo:hi, :],
                          preferred_element_type=f32)         # [H, S, hd]
        ctx_rows.append(jnp.concatenate([ctx3[h] for h in range(H)], axis=-1))

    ctx = jnp.concatenate(ctx_rows, axis=0) if bt > 1 else ctx_rows[0]   # [M, D]
    ctx = linear(ctx, wo_ref, bo_ref)

    # residual + LayerNorm 1 (dropout = identity in eval mode), f32 math
    h1 = x2 + ctx
    mu1 = jnp.mean(h1, axis=-1, keepdims=True)
    var1 = jnp.mean(jnp.square(h1 - mu1), axis=-1, keepdims=True)
    h1 = (h1 - mu1) * lax.rsqrt(var1 + 1e-5) * ln1g_ref[0] + ln1b_ref[0]

    # position-wise feed-forward (bf16 matmuls, f32 accumulate)
    f = jnp.maximum(linear(h1, w1_ref, b1_ref), 0.0)
    f = linear(f, w2_ref, b2_ref)

    # residual + LayerNorm 2
    h2 = h1 + f
    mu2 = jnp.mean(h2, axis=-1, keepdims=True)
    var2 = jnp.mean(jnp.square(h2 - mu2), axis=-1, keepdims=True)
    out = (h2 - mu2) * lax.rsqrt(var2 + 1e-5) * ln2g_ref[0] + ln2b_ref[0]

    out_ref[...] = out.reshape(bt, S, D).astype(out_ref.dtype)


# ----------------------------------------------------------------------------
# Wrapper helpers
# ----------------------------------------------------------------------------
def _weight_spec(shape):
    """Per-layer block of a layer-stacked parameter, indexed by the layer axis."""
    blk = (1,) + tuple(int(s) for s in shape[1:])
    zeros = (0,) * (len(shape) - 1)
    return pl.BlockSpec(blk, lambda b, l, _z=zeros: (l,) + _z)


def _vmem_limit_bytes():
    """~85% of this generation's VMEM (≈108 MiB on v5e/v6e, ≈54 MiB on v7x)."""
    try:
        cap = int(pltpu.get_tpu_info().vmem_capacity_bytes)
        return max(32 << 20, min(int(cap * 0.85), cap - (8 << 20)))
    except Exception:
        return 48 << 20          # conservative fallback, safe on all generations


def _estimate_vmem(bt, S, D, H, d_pf):
    """Rough per-grid-step VMEM footprint (double-buffered blocks + working set)."""
    M = bt * S
    x_io = 2 * 2 * bt * S * D * 4                   # x in + x carry, f32, x2 buffers
    mask = 2 * bt * S * 4
    attn = 2 * bt * H * S * S * 2                   # bf16 attn block, x2 buffers
    wts = 2 * 2 * (3 * D * D + D * D + 2 * D * d_pf)  # bf16 matmul weights, x2 buffers
    bias = 2 * 4 * (8 * D + d_pf)
    work = 4 * (3 * M * D + M * d_pf + 3 * M * D) + 4 * 3 * H * S * S
    return x_io + mask + attn + wts + bias + work


def _choose_block_b(B, S, D, H, d_pf, vmem_limit, *, target_rows=512, max_unroll=8):
    """Largest divisor of B with bt*S <= ~512 folded rows, >=2 batch tiles when
    possible (v7x megacore sharding), bounded unroll, and a VMEM budget check."""
    cap_rows = max(target_rows, S)
    bt_cap = B if B == 1 else max(1, B // 2)
    for bt in range(min(B, max_unroll, bt_cap), 0, -1):
        if B % bt:
            continue
        if bt * S > cap_rows:
            continue
        if _estimate_vmem(bt, S, D, H, d_pf) > 0.6 * vmem_limit:
            continue
        return bt
    return 1


def encoder_stack(x, mask, params, *, n_heads, block_b=None):
    """x: [B,S,D] f32, mask: [B,1,S] f32. Returns (x_out [B,S,D] f32, attn_last [B,H,S,S] bf16)."""
    B, S, D = x.shape
    assert D % n_heads == 0
    n_layers = params["wqkv"].shape[0]
    d_pf = params["w1"].shape[-1]

    vmem_limit = _vmem_limit_bytes()
    bt = block_b or _choose_block_b(B, S, D, n_heads, d_pf, vmem_limit)
    assert B % bt == 0, (B, bt)

    weight_names = ["wqkv", "bqkv", "wo", "bo", "ln1_g", "ln1_b",
                    "w1", "b1", "w2", "b2", "ln2_g", "ln2_b"]
    weights = [params[n] for n in weight_names]

    in_specs = [
        pl.BlockSpec((bt, S, D), lambda b, l: (b, 0, 0)),   # x (fetched once per tile)
        pl.BlockSpec((bt, 1, S), lambda b, l: (b, 0, 0)),   # mask
    ] + [_weight_spec(w.shape) for w in weights]            # streamed per layer

    out_specs = (
        pl.BlockSpec((bt, S, D), lambda b, l: (b, 0, 0)),              # x carry / output
        pl.BlockSpec((bt, n_heads, S, S), lambda b, l: (b, 0, 0, 0)),  # last-layer attn
    )
    out_shape = (
        jax.ShapeDtypeStruct((B, S, D), jnp.float32),
        jax.ShapeDtypeStruct((B, n_heads, S, S), jnp.bfloat16),        # bf16 writeback
    )

    kernel = functools.partial(_encoder_stack_kernel, n_heads=n_heads)
    return pl.pallas_call(
        kernel,
        out_shape=out_shape,
        grid_spec=pltpu.PrefetchScalarGridSpec(
            num_scalar_prefetch=0,
            grid=(B // bt, n_layers),          # layer axis innermost (VMEM carry)
            in_specs=in_specs,
            out_specs=out_specs,
        ),
        compiler_params=pltpu.CompilerParams(
            dimension_semantics=("parallel", "arbitrary"),
            vmem_limit_bytes=vmem_limit,
        ),
    )(x, mask, *weights)


# ----------------------------------------------------------------------------
# Parameter init (deterministic, synthetic) and full Encoder forward.
# Matmul weights are stored in bf16 (MXU fast path); biases / LN params in f32.
# ----------------------------------------------------------------------------
def init_encoder_params(key, *, input_dim, embed_dim, n_layers, d_pf, n_position):
    D = embed_dim
    ks = jax.random.split(key, 10)

    def w(k, shape, scale=0.02):
        return jax.random.normal(k, shape, jnp.float32) * scale

    return {
        "tok_emb": jax.random.normal(ks[0], (input_dim, D), jnp.float32),
        "pos_emb": jax.random.normal(ks[1], (n_position, D), jnp.float32),
        # per-layer weights stacked along a leading layer axis
        "wqkv": w(ks[2], (n_layers, D, 3 * D)).astype(jnp.bfloat16),   # fused Q|K|V
        "bqkv": w(ks[3], (n_layers, 1, 3 * D)),
        "wo":   w(ks[4], (n_layers, D, D)).astype(jnp.bfloat16),
        "bo":   w(ks[5], (n_layers, 1, D)),
        "ln1_g": jnp.ones((n_layers, 1, D), jnp.float32),
        "ln1_b": jnp.zeros((n_layers, 1, D), jnp.float32),
        "w1":   w(ks[6], (n_layers, D, d_pf)).astype(jnp.bfloat16),
        "b1":   w(ks[7], (n_layers, 1, d_pf)),
        "w2":   w(ks[8], (n_layers, d_pf, D)).astype(jnp.bfloat16),
        "b2":   w(ks[9], (n_layers, 1, D)),
        "ln2_g": jnp.ones((n_layers, 1, D), jnp.float32),
        "ln2_b": jnp.zeros((n_layers, 1, D), jnp.float32),
    }


def encoder_forward(src, src_mask, params, *, n_heads, block_b=None):
    """src: [B, S] int32 token ids; src_mask: [B, S] (1 = keep, 0 = pad)."""
    B, S = src.shape
    D = params["tok_emb"].shape[1]
    scale = jnp.sqrt(jnp.float32(D))

    # glue: embedding gathers + positional embedding + scale (dropout = identity)
    tok = jnp.take(params["tok_emb"], src, axis=0)                   # [B, S, D]
    pos = jnp.take(params["pos_emb"], jnp.arange(S), axis=0)[None]   # [1, S, D]
    x = (tok * scale + pos).astype(jnp.float32)

    mask = src_mask.astype(jnp.float32).reshape(B, 1, S)
    return encoder_stack(x, mask, params, n_heads=n_heads, block_b=block_b)


# ----------------------------------------------------------------------------
# Pure-jnp reference (f32 matmuls) with identical semantics, for validation.
# ----------------------------------------------------------------------------
def encoder_reference(src, src_mask, params, *, n_heads):
    B, S = src.shape
    D = params["tok_emb"].shape[1]
    H = n_heads
    hd = D // H
    L = params["wqkv"].shape[0]

    x = jnp.take(params["tok_emb"], src, axis=0) * jnp.sqrt(jnp.float32(D))
    x = x + jnp.take(params["pos_emb"], jnp.arange(S), axis=0)[None]
    keep = src_mask.astype(jnp.float32)[:, None, None, :] > 0.5       # [B,1,1,S]

    def ln(v, g, b):
        mu = jnp.mean(v, -1, keepdims=True)
        var = jnp.mean(jnp.square(v - mu), -1, keepdims=True)
        return (v - mu) * lax.rsqrt(var + 1e-5) * g + b

    attn = None
    for l in range(L):
        qkv = x @ params["wqkv"][l].astype(jnp.float32) + params["bqkv"][l]
        q, k, v = qkv[..., :D], qkv[..., D:2 * D], qkv[..., 2 * D:]

        def heads(t):
            return t.reshape(B, S, H, hd).transpose(0, 2, 1, 3)        # [B,H,S,hd]

        qh, kh, vh = heads(q), heads(k), heads(v)
        e = jnp.einsum('bhqd,bhkd->bhqk', qh, kh) / jnp.sqrt(jnp.float32(hd))
        e = jnp.where(keep, e, -1e10)
        attn = jax.nn.softmax(e, axis=-1)
        ctx = jnp.einsum('bhqk,bhkd->bhqd', attn, vh)
        ctx = ctx.transpose(0, 2, 1, 3).reshape(B, S, D)
        ctx = ctx @ params["wo"][l].astype(jnp.float32) + params["bo"][l]
        h1 = ln(x + ctx, params["ln1_g"][l], params["ln1_b"][l])
        f = jnp.maximum(h1 @ params["w1"][l].astype(jnp.float32) + params["b1"][l], 0.0)
        f = f @ params["w2"][l].astype(jnp.float32) + params["b2"][l]
        x = ln(h1 + f, params["ln2_g"][l], params["ln2_b"][l])
    return x, attn


# ----------------------------------------------------------------------------
if __name__ == "__main__":
    B, S = 2, 8
    input_dim = 50      # vocab size
    embed_dim = 32
    n_layers = 2
    n_heads = 4
    d_pf = 64
    n_position = 200

    key = jax.random.PRNGKey(0)
    pkey, skey = jax.random.split(key)
    params = init_encoder_params(
        pkey, input_dim=input_dim, embed_dim=embed_dim,
        n_layers=n_layers, d_pf=d_pf, n_position=n_position)

    # tokens in [1, vocab); mark the last two tokens of batch 1 as padding (id 0)
    src = jax.random.randint(skey, (B, S), 1, input_dim, dtype=jnp.int32)
    src = src.at[1, -2:].set(0)
    src_mask = (src != 0).astype(jnp.int32)   # [B, S]; torch version is [B,1,1,S]

    x_out, score = encoder_forward(src, src_mask, params, n_heads=n_heads)
    x_out = jax.block_until_ready(x_out)
    score = jax.block_until_ready(score)

    assert x_out.shape == (B, S, embed_dim)
    assert score.shape == (B, n_heads, S, S)
    score_f32 = score.astype(jnp.float32)
    assert bool(jnp.all(jnp.isfinite(x_out)))
    # attention rows sum to ~1 (bf16 storage -> loose tolerance)
    assert bool(jnp.allclose(jnp.sum(score_f32, axis=-1), 1.0, atol=1e-2))

    # numerical check against a pure-jnp f32 reference (kernel uses bf16 matmuls)
    x_ref, score_ref = encoder_reference(src, src_mask, params, n_heads=n_heads)
    assert bool(jnp.allclose(x_out, x_ref, atol=7e-2, rtol=7e-2))
    assert bool(jnp.allclose(score_f32, score_ref, atol=3e-2))

    print("KERNEL_OK")
</pallas_src>

<mosaic_0001>
module attributes {stable_mosaic.version = 11 : i64} {
  func.func @_encoder_stack_kernel(%arg0: i32, %arg1: i32, %arg2: memref<1x8x32xf32, #tpu.memory_space<vmem>>, %arg3: memref<1x1x8xf32, #tpu.memory_space<vmem>>, %arg4: memref<1x32x96xbf16, #tpu.memory_space<vmem>>, %arg5: memref<1x1x96xf32, #tpu.memory_space<vmem>>, %arg6: memref<1x32x32xbf16, #tpu.memory_space<vmem>>, %arg7: memref<1x1x32xf32, #tpu.memory_space<vmem>>, %arg8: memref<1x1x32xf32, #tpu.memory_space<vmem>>, %arg9: memref<1x1x32xf32, #tpu.memory_space<vmem>>, %arg10: memref<1x32x64xbf16, #tpu.memory_space<vmem>>, %arg11: memref<1x1x64xf32, #tpu.memory_space<vmem>>, %arg12: memref<1x64x32xbf16, #tpu.memory_space<vmem>>, %arg13: memref<1x1x32xf32, #tpu.memory_space<vmem>>, %arg14: memref<1x1x32xf32, #tpu.memory_space<vmem>>, %arg15: memref<1x1x32xf32, #tpu.memory_space<vmem>>, %arg16: memref<1x8x32xf32, #tpu.memory_space<vmem>>, %arg17: memref<1x4x8x8xbf16, #tpu.memory_space<vmem>>) attributes {dimension_semantics = [#tpu.dimension_semantics<parallel>, #tpu.dimension_semantics<arbitrary>], iteration_bounds = array<i64: 2, 2>, scalar_prefetch = 0 : i64, scratch_operands = 0 : i64, tpu.core_type = #tpu.core_type<tc>, window_params = [{transform_indices = @transform_0, window_bounds = array<i64: 1, 8, 32>}, {transform_indices = @transform_1, window_bounds = array<i64: 1, 1, 8>}, {transform_indices = @transform_2, window_bounds = array<i64: 1, 32, 96>}, {transform_indices = @transform_3, window_bounds = array<i64: 1, 1, 96>}, {transform_indices = @transform_4, window_bounds = array<i64: 1, 32, 32>}, {transform_indices = @transform_5, window_bounds = array<i64: 1, 1, 32>}, {transform_indices = @transform_6, window_bounds = array<i64: 1, 1, 32>}, {transform_indices = @transform_7, window_bounds = array<i64: 1, 1, 32>}, {transform_indices = @transform_8, window_bounds = array<i64: 1, 32, 64>}, {transform_indices = @transform_9, window_bounds = array<i64: 1, 1, 64>}, {transform_indices = @transform_10, window_bounds = array<i64: 1, 64, 32>}, {transform_indices = @transform_11, window_bounds = array<i64: 1, 1, 32>}, {transform_indices = @transform_12, window_bounds = array<i64: 1, 1, 32>}, {transform_indices = @transform_13, window_bounds = array<i64: 1, 1, 32>}, {transform_indices = @transform_14, window_bounds = array<i64: 1, 8, 32>}, {transform_indices = @transform_15, window_bounds = array<i64: 1, 4, 8, 8>}]} {
    %c0_i32 = arith.constant 0 : i32
    %0 = arith.cmpi eq, %arg1, %c0_i32 : i32
    %1 = arith.extui %0 : i1 to i32
    %c0_i32_0 = arith.constant 0 : i32
    %2 = arith.cmpi ne, %1, %c0_i32_0 : i32
    scf.if %2 {
      %c0_68 = arith.constant 0 : index
      %c0_69 = arith.constant 0 : index
      %c0_70 = arith.constant 0 : index
      %165 = vector.load %arg2[%c0_68, %c0_69, %c0_70] : memref<1x8x32xf32, #tpu.memory_space<vmem>>, vector<1x8x32xf32>
      %c0_71 = arith.constant 0 : index
      %c0_72 = arith.constant 0 : index
      %c0_73 = arith.constant 0 : index
      %166 = vector.load %arg16[%c0_71, %c0_72, %c0_73] : memref<1x8x32xf32, #tpu.memory_space<vmem>>, vector<1x8x32xf32>
      tpu.vector_store %arg16[%c0_71, %c0_72, %c0_73], %165 {strides = array<i32>} : memref<1x8x32xf32, #tpu.memory_space<vmem>>, vector<1x8x32xf32>,
    } else {
    }
    %c0 = arith.constant 0 : index
    %c0_1 = arith.constant 0 : index
    %c0_2 = arith.constant 0 : index
    %3 = vector.load %arg16[%c0, %c0_1, %c0_2] : memref<1x8x32xf32, #tpu.memory_space<vmem>>, vector<1x8x32xf32>
    %4 = vector.shape_cast %3 : vector<1x8x32xf32> to vector<8x32xf32>
    %5 = arith.truncf %4 : vector<8x32xf32> to vector<8x32xbf16>
    %c0_3 = arith.constant 0 : index
    %c0_4 = arith.constant 0 : index
    %c0_5 = arith.constant 0 : index
    %6 = vector.load %arg4[%c0_3, %c0_4, %c0_5] : memref<1x32x96xbf16, #tpu.memory_space<vmem>>, vector<1x32x96xbf16>
    %7 = vector.shape_cast %6 : vector<1x32x96xbf16> to vector<32x96xbf16>
    %cst = arith.constant dense<0.000000e+00> : vector<8x96xf32>
    %8 = tpu.matmul %5, %7, %cst {dimension_numbers = #tpu.dot_dimension_numbers<[1], [0], [0], [1], [0, 0, 1, 1], [], []>} : vector<8x32xbf16>, vector<32x96xbf16>, vector<8x96xf32> -> vector<8x96xf32>
    %c0_6 = arith.constant 0 : index
    %c0_7 = arith.constant 0 : index
    %c0_8 = arith.constant 0 : index
    %9 = vector.load %arg5[%c0_6, %c0_7, %c0_8] : memref<1x1x96xf32, #tpu.memory_space<vmem>>, vector<1x1x96xf32>
    %10 = vector.shape_cast %9 : vector<1x1x96xf32> to vector<1x96xf32>
    %11 = vector.broadcast %10 : vector<1x96xf32> to vector<8x96xf32>
    %12 = arith.addf %8, %11 : vector<8x96xf32>
    %13 = vector.extract_strided_slice %12 {offsets = [0, 0], sizes = [8, 32], strides = [1, 1]} : vector<8x96xf32> to vector<8x32xf32>
    %cst_9 = arith.constant 0.353553385 : f32
    %14 = vector.broadcast %cst_9 : f32 to vector<8x32xf32>
    %15 = arith.mulf %13, %14 : vector<8x32xf32>
    %16 = arith.truncf %15 : vector<8x32xf32> to vector<8x32xbf16>
    %17 = vector.extract_strided_slice %12 {offsets = [0, 32], sizes = [8, 32], strides = [1, 1]} : vector<8x96xf32> to vector<8x32xf32>
    %18 = arith.truncf %17 : vector<8x32xf32> to vector<8x32xbf16>
    %19 = vector.extract_strided_slice %12 {offsets = [0, 64], sizes = [8, 32], strides = [1, 1]} : vector<8x96xf32> to vector<8x32xf32>
    %20 = arith.truncf %19 : vector<8x32xf32> to vector<8x32xbf16>
    %21 = vector.extract_strided_slice %16 {offsets = [0, 0], sizes = [8, 8], strides = [1, 1]} : vector<8x32xbf16> to vector<8x8xbf16>
    %22 = vector.extract_strided_slice %16 {offsets = [0, 8], sizes = [8, 8], strides = [1, 1]} : vector<8x32xbf16> to vector<8x8xbf16>
    %23 = vector.extract_strided_slice %16 {offsets = [0, 16], sizes = [8, 8], strides = [1, 1]} : vector<8x32xbf16> to vector<8x8xbf16>
    %24 = vector.extract_strided_slice %16 {offsets = [0, 24], sizes = [8, 8], strides = [1, 1]} : vector<8x32xbf16> to vector<8x8xbf16>
    %25 = vector.shape_cast %21 : vector<8x8xbf16> to vector<1x8x8xbf16>
    %26 = vector.shape_cast %22 : vector<8x8xbf16> to vector<1x8x8xbf16>
    %27 = vector.shape_cast %23 : vector<8x8xbf16> to vector<1x8x8xbf16>
    %28 = vector.shape_cast %24 : vector<8x8xbf16> to vector<1x8x8xbf16>
    %29 = tpu.concatenate %25, %26, %27, %28 in 0 : vector<1x8x8xbf16>, vector<1x8x8xbf16>, vector<1x8x8xbf16>, vector<1x8x8xbf16> -> vector<4x8x8xbf16>
    %30 = vector.extract_strided_slice %18 {offsets = [0, 0], sizes = [8, 8], strides = [1, 1]} : vector<8x32xbf16> to vector<8x8xbf16>
    %31 = vector.extract_strided_slice %18 {offsets = [0, 8], sizes = [8, 8], strides = [1, 1]} : vector<8x32xbf16> to vector<8x8xbf16>
    %32 = vector.extract_strided_slice %18 {offsets = [0, 16], sizes = [8, 8], strides = [1, 1]} : vector<8x32xbf16> to vector<8x8xbf16>
    %33 = vector.extract_strided_slice %18 {offsets = [0, 24], sizes = [8, 8], strides = [1, 1]} : vector<8x32xbf16> to vector<8x8xbf16>
    %34 = vector.shape_cast %30 : vector<8x8xbf16> to vector<1x8x8xbf16>
    %35 = vector.shape_cast %31 : vector<8x8xbf16> to vector<1x8x8xbf16>
    %36 = vector.shape_cast %32 : vector<8x8xbf16> to vector<1x8x8xbf16>
    %37 = vector.shape_cast %33 : vector<8x8xbf16> to vector<1x8x8xbf16>
    %38 = tpu.concatenate %34, %35, %36, %37 in 0 : vector<1x8x8xbf16>, vector<1x8x8xbf16>, vector<1x8x8xbf16>, vector<1x8x8xbf16> -> vector<4x8x8xbf16>
    %39 = vector.extract_strided_slice %20 {offsets = [0, 0], sizes = [8, 8], strides = [1, 1]} : vector<8x32xbf16> to vector<8x8xbf16>
    %40 = vector.extract_strided_slice %20 {offsets = [0, 8], sizes = [8, 8], strides = [1, 1]} : vector<8x32xbf16> to vector<8x8xbf16>
    %41 = vector.extract_strided_slice %20 {offsets = [0, 16], sizes = [8, 8], strides = [1, 1]} : vector<8x32xbf16> to vector<8x8xbf16>
    %42 = vector.extract_strided_slice %20 {offsets = [0, 24], sizes = [8, 8], strides = [1, 1]} : vector<8x32xbf16> to vector<8x8xbf16>
    %43 = vector.shape_cast %39 : vector<8x8xbf16> to vector<1x8x8xbf16>
    %44 = vector.shape_cast %40 : vector<8x8xbf16> to vector<1x8x8xbf16>
    %45 = vector.shape_cast %41 : vector<8x8xbf16> to vector<1x8x8xbf16>
    %46 = vector.shape_cast %42 : vector<8x8xbf16> to vector<1x8x8xbf16>
    %47 = tpu.concatenate %43, %44, %45, %46 in 0 : vector<1x8x8xbf16>, vector<1x8x8xbf16>, vector<1x8x8xbf16>, vector<1x8x8xbf16> -> vector<4x8x8xbf16>
    %c0_10 = arith.constant 0 : index
    %c0_11 = arith.constant 0 : index
    %c0_12 = arith.constant 0 : index
    %48 = vector.load %arg3[%c0_10, %c0_11, %c0_12] : memref<1x1x8xf32, #tpu.memory_space<vmem>>, vector<1x1x8xf32>
    %cst_13 = arith.constant 5.000000e-01 : f32
    %49 = vector.broadcast %cst_13 : f32 to vector<1x1x8xf32>
    %50 = arith.cmpf ogt, %48, %49 : vector<1x1x8xf32>
    %cst_14 = arith.constant 0.000000e+00 : f32
    %cst_15 = arith.constant -1.000000e+10 : f32
    %51 = vector.broadcast %cst_14 : f32 to vector<1x1x8xf32>
    %52 = vector.broadcast %cst_15 : f32 to vector<1x1x8xf32>
    %53 = arith.select %50, %51, %52 : vector<1x1x8xi1>, vector<1x1x8xf32>
    "tpu.trace_start"() <{level = 10 : i32, message = "hqd,hkd->hqk"}> : () -> ()
    %cst_16 = arith.constant dense<0.000000e+00> : vector<4x8x8xf32>
    %54 = tpu.matmul %29, %38, %cst_16 {dimension_numbers = #tpu.dot_dimension_numbers<[2], [2], [1], [1], [0, 0, 0, 1, 1, 1], [0], [0]>} : vector<4x8x8xbf16>, vector<4x8x8xbf16>, vector<4x8x8xf32> -> vector<4x8x8xf32>
    "tpu.trace_stop"() : () -> ()
    %55 = vector.shape_cast %53 : vector<1x1x8xf32> to vector<1x8xf32>
    %56 = vector.shape_cast %55 : vector<1x8xf32> to vector<1x1x8xf32>
    %57 = vector.broadcast %56 : vector<1x1x8xf32> to vector<4x8x8xf32>
    %58 = arith.addf %54, %57 : vector<4x8x8xf32>
    %cst_17 = arith.constant dense<0xFF800000> : vector<4x8xf32>
    %59 = vector.multi_reduction <maximumf>, %58, %cst_17 [2] : vector<4x8x8xf32> to vector<4x8xf32>
    %60 = vector.shape_cast %59 : vector<4x8xf32> to vector<4x8x1xf32>
    %61 = vector.broadcast %60 : vector<4x8x1xf32> to vector<4x8x8xf32>
    %62 = arith.subf %58, %61 : vector<4x8x8xf32>
    %63 = math.exp %62 : vector<4x8x8xf32>
    %cst_18 = arith.constant dense<0.000000e+00> : vector<4x8xf32>
    %64 = vector.multi_reduction <add>, %63, %cst_18 [2] : vector<4x8x8xf32> to vector<4x8xf32>
    %65 = vector.shape_cast %64 : vector<4x8xf32> to vector<4x8x1xf32>
    %66 = tpu.reciprocal %65 : vector<4x8x1xf32> -> vector<4x8x1xf32>
    %67 = vector.broadcast %66 : vector<4x8x1xf32> to vector<4x8x8xf32>
    %68 = arith.mulf %63, %67 : vector<4x8x8xf32>
    %c1_i32 = arith.constant 1 : i32
    %69 = arith.cmpi eq, %arg1, %c1_i32 : i32
    %70 = arith.extui %69 : i1 to i32
    %c0_i32_19 = arith.constant 0 : i32
    %71 = arith.cmpi ne, %70, %c0_i32_19 : i32
    scf.if %71 {
      %165 = arith.truncf %68 : vector<4x8x8xf32> to vector<4x8x8xbf16>
      %c0_68 = arith.constant 0 : index
      %c0_69 = arith.constant 0 : index
      %c0_70 = arith.constant 0 : index
      %c0_71 = arith.constant 0 : index
      %166 = vector.load %arg17[%c0_68, %c0_69, %c0_70, %c0_71] : memref<1x4x8x8xbf16, #tpu.memory_space<vmem>>, vector<1x4x8x8xbf16>
      %167 = vector.shape_cast %166 : vector<1x4x8x8xbf16> to vector<4x8x8xbf16>
      %168 = vector.shape_cast %165 : vector<4x8x8xbf16> to vector<1x4x8x8xbf16>
      tpu.vector_store %arg17[%c0_68, %c0_69, %c0_70, %c0_71], %168 {strides = array<i32>} : memref<1x4x8x8xbf16, #tpu.memory_space<vmem>>, vector<1x4x8x8xbf16>,
    } else {
    }
    %72 = arith.truncf %68 : vector<4x8x8xf32> to vector<4x8x8xbf16>
    "tpu.trace_start"() <{level = 10 : i32, message = "hqk,hkd->hqd"}> : () -> ()
    %cst_20 = arith.constant dense<0.000000e+00> : vector<4x8x8xf32>
    %73 = tpu.matmul %72, %47, %cst_20 {dimension_numbers = #tpu.dot_dimension_numbers<[2], [1], [1], [2], [0, 0, 0, 1, 1, 2], [0], [0]>} : vector<4x8x8xbf16>, vector<4x8x8xbf16>, vector<4x8x8xf32> -> vector<4x8x8xf32>
    "tpu.trace_stop"() : () -> ()
    %74 = vector.extract_strided_slice %73 {offsets = [0, 0, 0], sizes = [1, 8, 8], strides = [1, 1, 1]} : vector<4x8x8xf32> to vector<1x8x8xf32>
    %75 = vector.shape_cast %74 : vector<1x8x8xf32> to vector<8x8xf32>
    %76 = vector.extract_strided_slice %73 {offsets = [1, 0, 0], sizes = [1, 8, 8], strides = [1, 1, 1]} : vector<4x8x8xf32> to vector<1x8x8xf32>
    %77 = vector.shape_cast %76 : vector<1x8x8xf32> to vector<8x8xf32>
    %78 = vector.extract_strided_slice %73 {offsets = [2, 0, 0], sizes = [1, 8, 8], strides = [1, 1, 1]} : vector<4x8x8xf32> to vector<1x8x8xf32>
    %79 = vector.shape_cast %78 : vector<1x8x8xf32> to vector<8x8xf32>
    %80 = vector.extract_strided_slice %73 {offsets = [3, 0, 0], sizes = [1, 8, 8], strides = [1, 1, 1]} : vector<4x8x8xf32> to vector<1x8x8xf32>
    %81 = vector.shape_cast %80 : vector<1x8x8xf32> to vector<8x8xf32>
    %82 = tpu.concatenate %75, %77, %79, %81 in 1 : vector<8x8xf32>, vector<8x8xf32>, vector<8x8xf32>, vector<8x8xf32> -> vector<8x32xf32>
    %83 = arith.truncf %82 : vector<8x32xf32> to vector<8x32xbf16>
    %c0_21 = arith.constant 0 : index
    %c0_22 = arith.constant 0 : index
    %c0_23 = arith.constant 0 : index
    %84 = vector.load %arg6[%c0_21, %c0_22, %c0_23] : memref<1x32x32xbf16, #tpu.memory_space<vmem>>, vector<1x32x32xbf16>
    %85 = vector.shape_cast %84 : vector<1x32x32xbf16> to vector<32x32xbf16>
    %cst_24 = arith.constant dense<0.000000e+00> : vector<8x32xf32>
    %86 = tpu.matmul %83, %85, %cst_24 {dimension_numbers = #tpu.dot_dimension_numbers<[1], [0], [0], [1], [0, 0, 1, 1], [], []>} : vector<8x32xbf16>, vector<32x32xbf16>, vector<8x32xf32> -> vector<8x32xf32>
    %c0_25 = arith.constant 0 : index
    %c0_26 = arith.constant 0 : index
    %c0_27 = arith.constant 0 : index
    %87 = vector.load %arg7[%c0_25, %c0_26, %c0_27] : memref<1x1x32xf32, #tpu.memory_space<vmem>>, vector<1x1x32xf32>
    %88 = vector.shape_cast %87 : vector<1x1x32xf32> to vector<1x32xf32>
    %89 = vector.broadcast %88 : vector<1x32xf32> to vector<8x32xf32>
    %90 = arith.addf %86, %89 : vector<8x32xf32>
    %91 = arith.addf %4, %90 : vector<8x32xf32>
    %cst_28 = arith.constant dense<0.000000e+00> : vector<8xf32>
    %92 = vector.multi_reduction <add>, %91, %cst_28 [1] : vector<8x32xf32> to vector<8xf32>
    %93 = vector.shape_cast %92 : vector<8xf32> to vector<8x1xf32>
    %cst_29 = arith.constant 3.200000e+01 : f32
    %94 = vector.broadcast %cst_29 : f32 to vector<8x1xf32>
    %95 = arith.divf %93, %94 : vector<8x1xf32>
    %96 = vector.broadcast %95 : vector<8x1xf32> to vector<8x32xf32>
    %97 = arith.subf %91, %96 : vector<8x32xf32>
    %98 = arith.mulf %97, %97 : vector<8x32xf32>
    %cst_30 = arith.constant dense<0.000000e+00> : vector<8xf32>
    %99 = vector.multi_reduction <add>, %98, %cst_30 [1] : vector<8x32xf32> to vector<8xf32>
    %100 = vector.shape_cast %99 : vector<8xf32> to vector<8x1xf32>
    %cst_31 = arith.constant 3.200000e+01 : f32
    %101 = vector.broadcast %cst_31 : f32 to vector<8x1xf32>
    %102 = arith.divf %100, %101 : vector<8x1xf32>
    %103 = vector.broadcast %95 : vector<8x1xf32> to vector<8x32xf32>
    %104 = arith.subf %91, %103 : vector<8x32xf32>
    %cst_32 = arith.constant 9.99999974E-6 : f32
    %105 = vector.broadcast %cst_32 : f32 to vector<8x1xf32>
    %106 = arith.addf %102, %105 : vector<8x1xf32>
    %107 = math.rsqrt %106 : vector<8x1xf32>
    %108 = vector.broadcast %107 : vector<8x1xf32> to vector<8x32xf32>
    %109 = arith.mulf %104, %108 : vector<8x32xf32>
    %c0_33 = arith.constant 0 : index
    %c0_34 = arith.constant 0 : index
    %c0_35 = arith.constant 0 : index
    %110 = vector.load %arg8[%c0_33, %c0_34, %c0_35] : memref<1x1x32xf32, #tpu.memory_space<vmem>>, vector<1x1x32xf32>
    %111 = vector.shape_cast %110 : vector<1x1x32xf32> to vector<1x32xf32>
    %112 = vector.broadcast %111 : vector<1x32xf32> to vector<8x32xf32>
    %113 = arith.mulf %109, %112 : vector<8x32xf32>
    %c0_36 = arith.constant 0 : index
    %c0_37 = arith.constant 0 : index
    %c0_38 = arith.constant 0 : index
    %114 = vector.load %arg9[%c0_36, %c0_37, %c0_38] : memref<1x1x32xf32, #tpu.memory_space<vmem>>, vector<1x1x32xf32>
    %115 = vector.shape_cast %114 : vector<1x1x32xf32> to vector<1x32xf32>
    %116 = vector.broadcast %115 : vector<1x32xf32> to vector<8x32xf32>
    %117 = arith.addf %113, %116 : vector<8x32xf32>
    %118 = arith.truncf %117 : vector<8x32xf32> to vector<8x32xbf16>
    %c0_39 = arith.constant 0 : index
    %c0_40 = arith.constant 0 : index
    %c0_41 = arith.constant 0 : index
    %119 = vector.load %arg10[%c0_39, %c0_40, %c0_41] : memref<1x32x64xbf16, #tpu.memory_space<vmem>>, vector<1x32x64xbf16>
    %120 = vector.shape_cast %119 : vector<1x32x64xbf16> to vector<32x64xbf16>
    %cst_42 = arith.constant dense<0.000000e+00> : vector<8x64xf32>
    %121 = tpu.matmul %118, %120, %cst_42 {dimension_numbers = #tpu.dot_dimension_numbers<[1], [0], [0], [1], [0, 0, 1, 1], [], []>} : vector<8x32xbf16>, vector<32x64xbf16>, vector<8x64xf32> -> vector<8x64xf32>
    %c0_43 = arith.constant 0 : index
    %c0_44 = arith.constant 0 : index
    %c0_45 = arith.constant 0 : index
    %122 = vector.load %arg11[%c0_43, %c0_44, %c0_45] : memref<1x1x64xf32, #tpu.memory_space<vmem>>, vector<1x1x64xf32>
    %123 = vector.shape_cast %122 : vector<1x1x64xf32> to vector<1x64xf32>
    %124 = vector.broadcast %123 : vector<1x64xf32> to vector<8x64xf32>
    %125 = arith.addf %121, %124 : vector<8x64xf32>
    %cst_46 = arith.constant 0.000000e+00 : f32
    %126 = vector.broadcast %cst_46 : f32 to vector<8x64xf32>
    %127 = arith.maximumf %125, %126 : vector<8x64xf32>
    %128 = arith.truncf %127 : vector<8x64xf32> to vector<8x64xbf16>
    %c0_47 = arith.constant 0 : index
    %c0_48 = arith.constant 0 : index
    %c0_49 = arith.constant 0 : index
    %129 = vector.load %arg12[%c0_47, %c0_48, %c0_49] : memref<1x64x32xbf16, #tpu.memory_space<vmem>>, vector<1x64x32xbf16>
    %130 = vector.shape_cast %129 : vector<1x64x32xbf16> to vector<64x32xbf16>
    %cst_50 = arith.constant dense<0.000000e+00> : vector<8x32xf32>
    %131 = tpu.matmul %128, %130, %cst_50 {dimension_numbers = #tpu.dot_dimension_numbers<[1], [0], [0], [1], [0, 0, 1, 1], [], []>} : vector<8x64xbf16>, vector<64x32xbf16>, vector<8x32xf32> -> vector<8x32xf32>
    %c0_51 = arith.constant 0 : index
    %c0_52 = arith.constant 0 : index
    %c0_53 = arith.constant 0 : index
    %132 = vector.load %arg13[%c0_51, %c0_52, %c0_53] : memref<1x1x32xf32, #tpu.memory_space<vmem>>, vector<1x1x32xf32>
    %133 = vector.shape_cast %132 : vector<1x1x32xf32> to vector<1x32xf32>
    %134 = vector.broadcast %133 : vector<1x32xf32> to vector<8x32xf32>
    %135 = arith.addf %131, %134 : vector<8x32xf32>
    %136 = arith.addf %117, %135 : vector<8x32xf32>
    %cst_54 = arith.constant dense<0.000000e+00> : vector<8xf32>
    %137 = vector.multi_reduction <add>, %136, %cst_54 [1] : vector<8x32xf32> to vector<8xf32>
    %138 = vector.shape_cast %137 : vector<8xf32> to vector<8x1xf32>
    %cst_55 = arith.constant 3.200000e+01 : f32
    %139 = vector.broadcast %cst_55 : f32 to vector<8x1xf32>
    %140 = arith.divf %138, %139 : vector<8x1xf32>
    %141 = vector.broadcast %140 : vector<8x1xf32> to vector<8x32xf32>
    %142 = arith.subf %136, %141 : vector<8x32xf32>
    %143 = arith.mulf %142, %142 : vector<8x32xf32>
    %cst_56 = arith.constant dense<0.000000e+00> : vector<8xf32>
    %144 = vector.multi_reduction <add>, %143, %cst_56 [1] : vector<8x32xf32> to vector<8xf32>
    %145 = vector.shape_cast %144 : vector<8xf32> to vector<8x1xf32>
    %cst_57 = arith.constant 3.200000e+01 : f32
    %146 = vector.broadcast %cst_57 : f32 to vector<8x1xf32>
    %147 = arith.divf %145, %146 : vector<8x1xf32>
    %148 = vector.broadcast %140 : vector<8x1xf32> to vector<8x32xf32>
    %149 = arith.subf %136, %148 : vector<8x32xf32>
    %cst_58 = arith.constant 9.99999974E-6 : f32
    %150 = vector.broadcast %cst_58 : f32 to vector<8x1xf32>
    %151 = arith.addf %147, %150 : vector<8x1xf32>
    %152 = math.rsqrt %151 : vector<8x1xf32>
    %153 = vector.broadcast %152 : vector<8x1xf32> to vector<8x32xf32>
    %154 = arith.mulf %149, %153 : vector<8x32xf32>
    %c0_59 = arith.constant 0 : index
    %c0_60 = arith.constant 0 : index
    %c0_61 = arith.constant 0 : index
    %155 = vector.load %arg14[%c0_59, %c0_60, %c0_61] : memref<1x1x32xf32, #tpu.memory_space<vmem>>, vector<1x1x32xf32>
    %156 = vector.shape_cast %155 : vector<1x1x32xf32> to vector<1x32xf32>
    %157 = vector.broadcast %156 : vector<1x32xf32> to vector<8x32xf32>
    %158 = arith.mulf %154, %157 : vector<8x32xf32>
    %c0_62 = arith.constant 0 : index
    %c0_63 = arith.constant 0 : index
    %c0_64 = arith.constant 0 : index
    %159 = vector.load %arg15[%c0_62, %c0_63, %c0_64] : memref<1x1x32xf32, #tpu.memory_space<vmem>>, vector<1x1x32xf32>
    %160 = vector.shape_cast %159 : vector<1x1x32xf32> to vector<1x32xf32>
    %161 = vector.broadcast %160 : vector<1x32xf32> to vector<8x32xf32>
    %162 = arith.addf %158, %161 : vector<8x32xf32>
    %163 = vector.shape_cast %162 : vector<8x32xf32> to vector<1x8x32xf32>
    %c0_65 = arith.constant 0 : index
    %c0_66 = arith.constant 0 : index
    %c0_67 = arith.constant 0 : index
    %164 = vector.load %arg16[%c0_65, %c0_66, %c0_67] : memref<1x8x32xf32, #tpu.memory_space<vmem>>, vector<1x8x32xf32>
    tpu.vector_store %arg16[%c0_65, %c0_66, %c0_67], %163 {strides = array<i32>} : memref<1x8x32xf32, #tpu.memory_space<vmem>>, vector<1x8x32xf32>,
    return
  }
  func.func @transform_0(%arg0: i32, %arg1: i32) -> (i32, i32, i32) {
    %c0_i32 = arith.constant 0 : i32
    %c0_i32_0 = arith.constant 0 : i32
    %c0_i32_1 = arith.constant 0 : i32
    return %arg0, %c0_i32, %c0_i32_0 : i32, i32, i32
  }
  func.func @transform_1(%arg0: i32, %arg1: i32) -> (i32, i32, i32) {
    %c0_i32 = arith.constant 0 : i32
    %c0_i32_0 = arith.constant 0 : i32
    %c0_i32_1 = arith.constant 0 : i32
    return %arg0, %c0_i32, %c0_i32_0 : i32, i32, i32
  }
  func.func @transform_2(%arg0: i32, %arg1: i32) -> (i32, i32, i32) {
    %c0_i32 = arith.constant 0 : i32
    %c0_i32_0 = arith.constant 0 : i32
    %c0_i32_1 = arith.constant 0 : i32
    return %arg1, %c0_i32, %c0_i32_0 : i32, i32, i32
  }
  func.func @transform_3(%arg0: i32, %arg1: i32) -> (i32, i32, i32) {
    %c0_i32 = arith.constant 0 : i32
    %c0_i32_0 = arith.constant 0 : i32
    %c0_i32_1 = arith.constant 0 : i32
    return %arg1, %c0_i32, %c0_i32_0 : i32, i32, i32
  }
  func.func @transform_4(%arg0: i32, %arg1: i32) -> (i32, i32, i32) {
    %c0_i32 = arith.constant 0 : i32
    %c0_i32_0 = arith.constant 0 : i32
    %c0_i32_1 = arith.constant 0 : i32
    return %arg1, %c0_i32, %c0_i32_0 : i32, i32, i32
  }
  func.func @transform_5(%arg0: i32, %arg1: i32) -> (i32, i32, i32) {
    %c0_i32 = arith.constant 0 : i32
    %c0_i32_0 = arith.constant 0 : i32
    %c0_i32_1 = arith.constant 0 : i32
    return %arg1, %c0_i32, %c0_i32_0 : i32, i32, i32
  }
  func.func @transform_6(%arg0: i32, %arg1: i32) -> (i32, i32, i32) {
    %c0_i32 = arith.constant 0 : i32
    %c0_i32_0 = arith.constant 0 : i32
    %c0_i32_1 = arith.constant 0 : i32
    return %arg1, %c0_i32, %c0_i32_0 : i32, i32, i32
  }
  func.func @transform_7(%arg0: i32, %arg1: i32) -> (i32, i32, i32) {
    %c0_i32 = arith.constant 0 : i32
    %c0_i32_0 = arith.constant 0 : i32
    %c0_i32_1 = arith.constant 0 : i32
    return %arg1, %c0_i32, %c0_i32_0 : i32, i32, i32
  }
  func.func @transform_8(%arg0: i32, %arg1: i32) -> (i32, i32, i32) {
    %c0_i32 = arith.constant 0 : i32
    %c0_i32_0 = arith.constant 0 : i32
    %c0_i32_1 = arith.constant 0 : i32
    return %arg1, %c0_i32, %c0_i32_0 : i32, i32, i32
  }
  func.func @transform_9(%arg0: i32, %arg1: i32) -> (i32, i32, i32) {
    %c0_i32 = arith.constant 0 : i32
    %c0_i32_0 = arith.constant 0 : i32
    %c0_i32_1 = arith.constant 0 : i32
    return %arg1, %c0_i32, %c0_i32_0 : i32, i32, i32
  }
  func.func @transform_10(%arg0: i32, %arg1: i32) -> (i32, i32, i32) {
    %c0_i32 = arith.constant 0 : i32
    %c0_i32_0 = arith.constant 0 : i32
    %c0_i32_1 = arith.constant 0 : i32
    return %arg1, %c0_i32, %c0_i32_0 : i32, i32, i32
  }
  func.func @transform_11(%arg0: i32, %arg1: i32) -> (i32, i32, i32) {
    %c0_i32 = arith.constant 0 : i32
    %c0_i32_0 = arith.constant 0 : i32
    %c0_i32_1 = arith.constant 0 : i32
    return %arg1, %c0_i32, %c0_i32_0 : i32, i32, i32
  }
  func.func @transform_12(%arg0: i32, %arg1: i32) -> (i32, i32, i32) {
    %c0_i32 = arith.constant 0 : i32
    %c0_i32_0 = arith.constant 0 : i32
    %c0_i32_1 = arith.constant 0 : i32
    return %arg1, %c0_i32, %c0_i32_0 : i32, i32, i32
  }
  func.func @transform_13(%arg0: i32, %arg1: i32) -> (i32, i32, i32) {
    %c0_i32 = arith.constant 0 : i32
    %c0_i32_0 = arith.constant 0 : i32
    %c0_i32_1 = arith.constant 0 : i32
    return %arg1, %c0_i32, %c0_i32_0 : i32, i32, i32
  }
  func.func @transform_14(%arg0: i32, %arg1: i32) -> (i32, i32, i32) {
    %c0_i32 = arith.constant 0 : i32
    %c0_i32_0 = arith.constant 0 : i32
    %c0_i32_1 = arith.constant 0 : i32
    return %arg0, %c0_i32, %c0_i32_0 : i32, i32, i32
  }
  func.func @transform_15(%arg0: i32, %arg1: i32) -> (i32, i32, i32, i32) {
    %c0_i32 = arith.constant 0 : i32
    %c0_i32_0 = arith.constant 0 : i32
    %c0_i32_1 = arith.constant 0 : i32
    %c0_i32_2 = arith.constant 0 : i32
    return %arg0, %c0_i32, %c0_i32_0, %c0_i32_1 : i32, i32, i32, i32
  }
}

</mosaic_0001>

<llo_original>
// kernel: tpu_custom_call.1
$region0: #{tpu_custom_call.1}
  #allocation0 [shape = 'u32[]', space=smem, size = 0x4, offset = 0x4, fixed_abs, tag = 'smem constant byte address 0x4 - core index']
  #allocation1 [shape = 'u32[144,128]{1,0:T(1,128)}', space=vmem, size = 0x12000, scoped, tag = 'internal scratch']
  %s0 = inlined_call_operand.hbm [shape: f32[2,8,32], index: 0, kind: input, shape index: {}]
  %s1 = inlined_call_operand.hbm [shape: f32[2,1,8], index: 1, kind: input, shape index: {}]
  %s2 = inlined_call_operand.vmem [shape: bf16[2,32,96], index: 2, kind: input, shape index: {}]
  %s3 = inlined_call_operand.vmem [shape: f32[2,1,96], index: 3, kind: input, shape index: {}]
  %s4 = inlined_call_operand.vmem [shape: bf16[2,32,32], index: 4, kind: input, shape index: {}]
  %s5 = inlined_call_operand.vmem [shape: f32[2,1,32], index: 5, kind: input, shape index: {}]
  %s6 = inlined_call_operand.vmem [shape: f32[2,1,32], index: 6, kind: input, shape index: {}]
  %s7 = inlined_call_operand.vmem [shape: f32[2,1,32], index: 7, kind: input, shape index: {}]
  %s8 = inlined_call_operand.vmem [shape: bf16[2,32,64], index: 8, kind: input, shape index: {}]
  %s9 = inlined_call_operand.vmem [shape: f32[2,1,64], index: 9, kind: input, shape index: {}]
  %s10 = inlined_call_operand.vmem [shape: bf16[2,64,32], index: 10, kind: input, shape index: {}]
  %s11 = inlined_call_operand.vmem [shape: f32[2,1,32], index: 11, kind: input, shape index: {}]
  %s12 = inlined_call_operand.vmem [shape: f32[2,1,32], index: 12, kind: input, shape index: {}]
  %s13 = inlined_call_operand.vmem [shape: f32[2,1,32], index: 13, kind: input, shape index: {}]
  %s14 = inlined_call_operand.hbm [shape: f32[2,8,32], index: 14, kind: output, shape index: {0}]
  %s15 = inlined_call_operand.hbm [shape: bf16[2,4,8,8], index: 15, kind: output, shape index: {1}]
  %16 = xla_tuple %s14, %s15
  %s17 = sld [smem:[#allocation0]]
  $region113: #{tpu_custom_call.1} parent=0
    _
  %s19 = ssub.s32 1, %s17
  %s20 = scalar_select 0, %s19, %s17
  $region1: #{tpu_custom_call.1} parent=0
    #allocation2 [shape = 'u8[8192]{0}', space=vmem, size = 0x2000, scoped, tag = 'input window, operand 0']
    #allocation3 [shape = 's32[2]{0}', space=sflag, size = 0x8, scoped, tag = 'scoped memory for tpu_custom_call.1']
    #allocation4 [shape = 's32[2]{0}', space=sflag, size = 0x8, scoped, tag = 'scoped memory for tpu_custom_call.1']
    #allocation5 [shape = 'u8[1024]{0}', space=vmem, size = 0x400, scoped, tag = 'input window, operand 1']
    #allocation6 [shape = 's32[2]{0}', space=sflag, size = 0x8, scoped, tag = 'scoped memory for tpu_custom_call.1']
    #allocation7 [shape = 'u8[8192]{0}', space=vmem, size = 0x2000, scoped, tag = 'output window, operand 0']
    #allocation8 [shape = 'u8[16384]{0}', space=vmem, size = 0x4000, scoped, tag = 'output window, operand 1']
    #allocation9 [shape = 's32[2]{0}', space=sflag, size = 0x8, scoped, tag = 'scoped memory for tpu_custom_call.1']
    %21 = vsyncpa [#allocation3], 0
    %s22 = scalar_lea.sflag [#allocation3], 1
    %23 = vsyncpa %s22, 0
    %24 = vsyncpa [#allocation6], 0
    %s25 = scalar_lea.sflag [#allocation6], 1
    %26 = vsyncpa %s25, 0
    %27 = vsyncpa [#allocation4], 0
    %s28 = scalar_lea.sflag [#allocation4], 1
    %29 = vsyncpa %s28, 0
    %30 = vsyncpa [#allocation9], 0
    %s31 = scalar_lea.sflag [#allocation9], 1
    %32 = vsyncpa %s31, 0
    loop: start=0, step=1, limit=6
    $region2: #{tpu_custom_call.1} parent=1 // loop_pre_header
      _
    $region3: #{tpu_custom_call.1} parent=1 // loop_header
      %s34 = sphi 0, %s38
      %p35 = scmp.ge.s32.totalorder %s34, 6
      %s41 = sphi 0, %s53
      %s42 = sphi 0, %s49
      %s43 = sphi 0, %s41
      %s44 = sphi 0, %s42
      %s45 = sphi 0, %s43
      %s46 = sphi 0, %s44
      %s56 = sphi 0, %s58
      %s59 = sphi 0, %s56
      %s60 = sphi 0, %s59
      %s76 = sphi 0, %s60
      %s82 = sphi 0, %s84
      %s85 = sphi 0, %s82
      %s86 = sphi 0, %s85
      %s102 = sphi 0, %s86
      %s108 = sphi 0, %s110
      %s111 = sphi 0, %s108
      %s112 = sphi 0, %s111
      %s128 = sphi 0, %s112
      %s134 = sphi 0, %s136
      %s137 = sphi 0, %s134
      %s138 = sphi 0, %s137
      %s154 = sphi 0, %s138
      %s160 = sphi 0, %s162
      %s163 = sphi 0, %s160
      %s164 = sphi 0, %s163
      %s180 = sphi 0, %s164
      %s186 = sphi 0, %s188
      %s189 = sphi 0, %s186
      %s190 = sphi 0, %s189
      %s206 = sphi 0, %s190
      %s212 = sphi 0, %s214
      %s215 = sphi 0, %s212
      %s216 = sphi 0, %s215
      %s232 = sphi 0, %s216
      %s238 = sphi 0, %s240
      %s241 = sphi 0, %s238
      %s242 = sphi 0, %s241
      %s258 = sphi 0, %s242
      %s264 = sphi 0, %s266
      %s267 = sphi 0, %s264
      %s268 = sphi 0, %s267
      %s284 = sphi 0, %s268
      %s290 = sphi 0, %s292
      %s293 = sphi 0, %s290
      %s294 = sphi 0, %s293
      %s310 = sphi 0, %s294
      %s316 = sphi 0, %s318
      %s319 = sphi 0, %s316
      %s320 = sphi 0, %s319
      %s336 = sphi 0, %s320
      %s342 = sphi 0, %s344
      %s345 = sphi 0, %s342
      %s346 = sphi 0, %s345
      %s362 = sphi 0, %s346
      %s368 = sphi 0, %s370
      %s371 = sphi 0, %s368
      %s372 = sphi 0, %s371
      %s388 = sphi 0, %s372
      %s394 = sphi 0, %s396
      %s397 = sphi 0, %s394
      %s398 = sphi 0, %s397
      %s414 = sphi 0, %s398
      %s420 = sphi 0, %s422
      %s423 = sphi 0, %s420
      %s424 = sphi 0, %s423
      %s440 = sphi 0, %s424
      %s446 = sphi 0, %s448
      %s449 = sphi 0, %s446
      %s450 = sphi 0, %s449
      %s466 = sphi 0, %s450
    $region4: #{tpu_custom_call.1} parent=1 // loop_header_branch
      %37 = sbr.rel (%p35) target = $region8
    $region5: #{tpu_custom_call.1} parent=1 // loop_body
      %s39 = ssub.s32 %s34, 1
      %s40 = ssub.s32 %s34, 2
      %s47 = sadd.s32 1, %s42
      %p48 = scmp.ge.s32.totalorder %s47, 2
      %s49 = scalar_select %p48, 0, %s47
      %s50 = sadd.s32 1, %s41
      %s51 = scalar_select %p48, %s50, %s41
      %p52 = scmp.ge.s32.totalorder %s51, 2
      %s53 = scalar_select %p52, 0, %s51
      %s54 = ssub.s32 %s41, %s53
      %p55 = scmp.eq.s32.totalorder %s54, 0
      %s57 = sadd.s32 %s56, 1
      %s58 = scalar_select %p55, %s56, %s57
      %p61 = pneg %p55
      %p62 = scmp.eq.s32.totalorder %s34, 3
      %p63 = por %p61, %p62
      %p64 = scmp.ne.s32.totalorder %s56, %s59
      %p65 = scmp.eq.s32.totalorder %s34, 0
      %p66 = por %p64, %p65
      %p67 = scmp.ne.s32.totalorder %s56, %s59
      %p68 = scmp.eq.s32.totalorder %s39, 3
      %p69 = por %p67, %p68
      %p70 = scmp.ne.s32.totalorder %s59, %s60
      %p71 = scmp.eq.s32.totalorder %s39, 0
      %p72 = por %p70, %p71
      %p73 = scmp.ne.s32.totalorder %s59, %s60
      %p74 = scmp.eq.s32.totalorder %s40, 3
      %p75 = por %p73, %p74
      %p77 = scmp.ne.s32.totalorder %s60, %s76
      %p78 = scmp.eq.s32.totalorder %s40, 0
      %p79 = por %p77, %p78
      %s80 = ssub.s32 %s41, %s53
      %p81 = scmp.eq.s32.totalorder %s80, 0
      %s83 = sadd.s32 %s82, 1
      %s84 = scalar_select %p81, %s82, %s83
      %p87 = pneg %p81
      %p88 = scmp.eq.s32.totalorder %s34, 3
      %p89 = por %p87, %p88
      %p90 = scmp.ne.s32.totalorder %s82, %s85
      %p91 = scmp.eq.s32.totalorder %s34, 0
      %p92 = por %p90, %p91
      %p93 = scmp.ne.s32.totalorder %s82, %s85
      %p94 = scmp.eq.s32.totalorder %s39, 3
      %p95 = por %p93, %p94
      %p96 = scmp.ne.s32.totalorder %s85, %s86
      %p97 = scmp.eq.s32.totalorder %s39, 0
      %p98 = por %p96, %p97
      %p99 = scmp.ne.s32.totalorder %s85, %s86
      %p100 = scmp.eq.s32.totalorder %s40, 3
      %p101 = por %p99, %p100
      %p103 = scmp.ne.s32.totalorder %s86, %s102
      %p104 = scmp.eq.s32.totalorder %s40, 0
      %p105 = por %p103, %p104
      %s106 = ssub.s32 %s42, %s49
      %p107 = scmp.eq.s32.totalorder %s106, 0
      %s109 = sadd.s32 %s108, 1
      %s110 = scalar_select %p107, %s108, %s109
      %p113 = pneg %p107
      %p114 = scmp.eq.s32.totalorder %s34, 3
      %p115 = por %p113, %p114
      %p116 = scmp.ne.s32.totalorder %s108, %s111
      %p117 = scmp.eq.s32.totalorder %s34, 0
      %p118 = por %p116, %p117
      %p119 = scmp.ne.s32.totalorder %s108, %s111
      %p120 = scmp.eq.s32.totalorder %s39, 3
      %p121 = por %p119, %p120
      %p122 = scmp.ne.s32.totalorder %s111, %s112
      %p123 = scmp.eq.s32.totalorder %s39, 0
      %p124 = por %p122, %p123
      %p125 = scmp.ne.s32.totalorder %s111, %s112
      %p126 = scmp.eq.s32.totalorder %s40, 3
      %p127 = por %p125, %p126
      %p129 = scmp.ne.s32.totalorder %s112, %s128
      %p130 = scmp.eq.s32.totalorder %s40, 0
      %p131 = por %p129, %p130
      %s132 = ssub.s32 %s42, %s49
      %p133 = scmp.eq.s32.totalorder %s132, 0
      %s135 = sadd.s32 %s134, 1
      %s136 = scalar_select %p133, %s134, %s135
      %p139 = pneg %p133
      %p140 = scmp.eq.s32.totalorder %s34, 3
      %p141 = por %p139, %p140
      %p142 = scmp.ne.s32.totalorder %s134, %s137
      %p143 = scmp.eq.s32.totalorder %s34, 0
      %p144 = por %p142, %p143
      %p145 = scmp.ne.s32.totalorder %s134, %s137
      %p146 = scmp.eq.s32.totalorder %s39, 3
      %p147 = por %p145, %p146
      %p148 = scmp.ne.s32.totalorder %s137, %s138
      %p149 = scmp.eq.s32.totalorder %s39, 0
      %p150 = por %p148, %p149
      %p151 = scmp.ne.s32.totalorder %s137, %s138
      %p152 = scmp.eq.s32.totalorder %s40, 3
      %p153 = por %p151, %p152
      %p155 = scmp.ne.s32.totalorder %s138, %s154
      %p156 = scmp.eq.s32.totalorder %s40, 0
      %p157 = por %p155, %p156
      %s158 = ssub.s32 %s42, %s49
      %p159 = scmp.eq.s32.totalorder %s158, 0
      %s161 = sadd.s32 %s160, 1
      %s162 = scalar_select %p159, %s160, %s161
      %p165 = pneg %p159
      %p166 = scmp.eq.s32.totalorder %s34, 3
      %p167 = por %p165, %p166
      %p168 = scmp.ne.s32.totalorder %s160, %s163
      %p169 = scmp.eq.s32.totalorder %s34, 0
      %p170 = por %p168, %p169
      %p171 = scmp.ne.s32.totalorder %s160, %s163
      %p172 = scmp.eq.s32.totalorder %s39, 3
      %p173 = por %p171, %p172
      %p174 = scmp.ne.s32.totalorder %s163, %s164
      %p175 = scmp.eq.s32.totalorder %s39, 0
      %p176 = por %p174, %p175
      %p177 = scmp.ne.s32.totalorder %s163, %s164
      %p178 = scmp.eq.s32.totalorder %s40, 3
      %p179 = por %p177, %p178
      %p181 = scmp.ne.s32.totalorder %s164, %s180
      %p182 = scmp.eq.s32.totalorder %s40, 0
      %p183 = por %p181, %p182
      %s184 = ssub.s32 %s42, %s49
      %p185 = scmp.eq.s32.totalorder %s184, 0
      %s187 = sadd.s32 %s186, 1
      %s188 = scalar_select %p185, %s186, %s187
      %p191 = pneg %p185
      %p192 = scmp.eq.s32.totalorder %s34, 3
      %p193 = por %p191, %p192
      %p194 = scmp.ne.s32.totalorder %s186, %s189
      %p195 = scmp.eq.s32.totalorder %s34, 0
      %p196 = por %p194, %p195
      %p197 = scmp.ne.s32.totalorder %s186, %s189
      %p198 = scmp.eq.s32.totalorder %s39, 3
      %p199 = por %p197, %p198
      %p200 = scmp.ne.s32.totalorder %s189, %s190
      %p201 = scmp.eq.s32.totalorder %s39, 0
      %p202 = por %p200, %p201
      %p203 = scmp.ne.s32.totalorder %s189, %s190
      %p204 = scmp.eq.s32.totalorder %s40, 3
      %p205 = por %p203, %p204
      %p207 = scmp.ne.s32.totalorder %s190, %s206
      %p208 = scmp.eq.s32.totalorder %s40, 0
      %p209 = por %p207, %p208
      %s210 = ssub.s32 %s42, %s49
      %p211 = scmp.eq.s32.totalorder %s210, 0
      %s213 = sadd.s32 %s212, 1
      %s214 = scalar_select %p211, %s212, %s213
      %p217 = pneg %p211
      %p218 = scmp.eq.s32.totalorder %s34, 3
      %p219 = por %p217, %p218
      %p220 = scmp.ne.s32.totalorder %s212, %s215
      %p221 = scmp.eq.s32.totalorder %s34, 0
      %p222 = por %p220, %p221
      %p223 = scmp.ne.s32.totalorder %s212, %s215
      %p224 = scmp.eq.s32.totalorder %s39, 3
      %p225 = por %p223, %p224
      %p226 = scmp.ne.s32.totalorder %s215, %s216
      %p227 = scmp.eq.s32.totalorder %s39, 0
      %p228 = por %p226, %p227
      %p229 = scmp.ne.s32.totalorder %s215, %s216
      %p230 = scmp.eq.s32.totalorder %s40, 3
      %p231 = por %p229, %p230
      %p233 = scmp.ne.s32.totalorder %s216, %s232
      %p234 = scmp.eq.s32.totalorder %s40, 0
      %p235 = por %p233, %p234
      %s236 = ssub.s32 %s42, %s49
      %p237 = scmp.eq.s32.totalorder %s236, 0
      %s239 = sadd.s32 %s238, 1
      %s240 = scalar_select %p237, %s238, %s239
      %p243 = pneg %p237
      %p244 = scmp.eq.s32.totalorder %s34, 3
      %p245 = por %p243, %p244
      %p246 = scmp.ne.s32.totalorder %s238, %s241
      %p247 = scmp.eq.s32.totalorder %s34, 0
      %p248 = por %p246, %p247
      %p249 = scmp.ne.s32.totalorder %s238, %s241
      %p250 = scmp.eq.s32.totalorder %s39, 3
      %p251 = por %p249, %p250
      %p252 = scmp.ne.s32.totalorder %s241, %s242
      %p253 = scmp.eq.s32.totalorder %s39, 0
      %p254 = por %p252, %p253
      %p255 = scmp.ne.s32.totalorder %s241, %s242
      %p256 = scmp.eq.s32.totalorder %s40, 3
      %p257 = por %p255, %p256
      %p259 = scmp.ne.s32.totalorder %s242, %s258
      %p260 = scmp.eq.s32.totalorder %s40, 0
      %p261 = por %p259, %p260
      %s262 = ssub.s32 %s42, %s49
      %p263 = scmp.eq.s32.totalorder %s262, 0
      %s265 = sadd.s32 %s264, 1
      %s266 = scalar_select %p263, %s264, %s265
      %p269 = pneg %p263
      %p270 = scmp.eq.s32.totalorder %s34, 3
      %p271 = por %p269, %p270
      %p272 = scmp.ne.s32.totalorder %s264, %s267
      %p273 = scmp.eq.s32.totalorder %s34, 0
      %p274 = por %p272, %p273
      %p275 = scmp.ne.s32.totalorder %s264, %s267
      %p276 = scmp.eq.s32.totalorder %s39, 3
      %p277 = por %p275, %p276
      %p278 = scmp.ne.s32.totalorder %s267, %s268
      %p279 = scmp.eq.s32.totalorder %s39, 0
      %p280 = por %p278, %p279
      %p281 = scmp.ne.s32.totalorder %s267, %s268
      %p282 = scmp.eq.s32.totalorder %s40, 3
      %p283 = por %p281, %p282
      %p285 = scmp.ne.s32.totalorder %s268, %s284
      %p286 = scmp.eq.s32.totalorder %s40, 0
      %p287 = por %p285, %p286
      %s288 = ssub.s32 %s42, %s49
      %p289 = scmp.eq.s32.totalorder %s288, 0
      %s291 = sadd.s32 %s290, 1
      %s292 = scalar_select %p289, %s290, %s291
      %p295 = pneg %p289
      %p296 = scmp.eq.s32.totalorder %s34, 3
      %p297 = por %p295, %p296
      %p298 = scmp.ne.s32.totalorder %s290, %s293
      %p299 = scmp.eq.s32.totalorder %s34, 0
      %p300 = por %p298, %p299
      %p301 = scmp.ne.s32.totalorder %s290, %s293
      %p302 = scmp.eq.s32.totalorder %s39, 3
      %p303 = por %p301, %p302
      %p304 = scmp.ne.s32.totalorder %s293, %s294
      %p305 = scmp.eq.s32.totalorder %s39, 0
      %p306 = por %p304, %p305
      %p307 = scmp.ne.s32.totalorder %s293, %s294
      %p308 = scmp.eq.s32.totalorder %s40, 3
      %p309 = por %p307, %p308
      %p311 = scmp.ne.s32.totalorder %s294, %s310
      %p312 = scmp.eq.s32.totalorder %s40, 0
      %p313 = por %p311, %p312
      %s314 = ssub.s32 %s42, %s49
      %p315 = scmp.eq.s32.totalorder %s314, 0
      %s317 = sadd.s32 %s316, 1
      %s318 = scalar_select %p315, %s316, %s317
      %p321 = pneg %p315
      %p322 = scmp.eq.s32.totalorder %s34, 3
      %p323 = por %p321, %p322
      %p324 = scmp.ne.s32.totalorder %s316, %s319
      %p325 = scmp.eq.s32.totalorder %s34, 0
      %p326 = por %p324, %p325
      %p327 = scmp.ne.s32.totalorder %s316, %s319
      %p328 = scmp.eq.s32.totalorder %s39, 3
      %p329 = por %p327, %p328
      %p330 = scmp.ne.s32.totalorder %s319, %s320
      %p331 = scmp.eq.s32.totalorder %s39, 0
      %p332 = por %p330, %p331
      %p333 = scmp.ne.s32.totalorder %s319, %s320
      %p334 = scmp.eq.s32.totalorder %s40, 3
      %p335 = por %p333, %p334
      %p337 = scmp.ne.s32.totalorder %s320, %s336
      %p338 = scmp.eq.s32.totalorder %s40, 0
      %p339 = por %p337, %p338
      %s340 = ssub.s32 %s42, %s49
      %p341 = scmp.eq.s32.totalorder %s340, 0
      %s343 = sadd.s32 %s342, 1
      %s344 = scalar_select %p341, %s342, %s343
      %p347 = pneg %p341
      %p348 = scmp.eq.s32.totalorder %s34, 3
      %p349 = por %p347, %p348
      %p350 = scmp.ne.s32.totalorder %s342, %s345
      %p351 = scmp.eq.s32.totalorder %s34, 0
      %p352 = por %p350, %p351
      %p353 = scmp.ne.s32.totalorder %s342, %s345
      %p354 = scmp.eq.s32.totalorder %s39, 3
      %p355 = por %p353, %p354
      %p356 = scmp.ne.s32.totalorder %s345, %s346
      %p357 = scmp.eq.s32.totalorder %s39, 0
      %p358 = por %p356, %p357
      %p359 = scmp.ne.s32.totalorder %s345, %s346
      %p360 = scmp.eq.s32.totalorder %s40, 3
      %p361 = por %p359, %p360
      %p363 = scmp.ne.s32.totalorder %s346, %s362
      %p364 = scmp.eq.s32.totalorder %s40, 0
      %p365 = por %p363, %p364
      %s366 = ssub.s32 %s42, %s49
      %p367 = scmp.eq.s32.totalorder %s366, 0
      %s369 = sadd.s32 %s368, 1
      %s370 = scalar_select %p367, %s368, %s369
      %p373 = pneg %p367
      %p374 = scmp.eq.s32.totalorder %s34, 3
      %p375 = por %p373, %p374
      %p376 = scmp.ne.s32.totalorder %s368, %s371
      %p377 = scmp.eq.s32.totalorder %s34, 0
      %p378 = por %p376, %p377
      %p379 = scmp.ne.s32.totalorder %s368, %s371
      %p380 = scmp.eq.s32.totalorder %s39, 3
      %p381 = por %p379, %p380
      %p382 = scmp.ne.s32.totalorder %s371, %s372
      %p383 = scmp.eq.s32.totalorder %s39, 0
      %p384 = por %p382, %p383
      %p385 = scmp.ne.s32.totalorder %s371, %s372
      %p386 = scmp.eq.s32.totalorder %s40, 3
      %p387 = por %p385, %p386
      %p389 = scmp.ne.s32.totalorder %s372, %s388
      %p390 = scmp.eq.s32.totalorder %s40, 0
      %p391 = por %p389, %p390
      %s392 = ssub.s32 %s42, %s49
      %p393 = scmp.eq.s32.totalorder %s392, 0
      %s395 = sadd.s32 %s394, 1
      %s396 = scalar_select %p393, %s394, %s395
      %p399 = pneg %p393
      %p400 = scmp.eq.s32.totalorder %s34, 3
      %p401 = por %p399, %p400
      %p402 = scmp.ne.s32.totalorder %s394, %s397
      %p403 = scmp.eq.s32.totalorder %s34, 0
      %p404 = por %p402, %p403
      %p405 = scmp.ne.s32.totalorder %s394, %s397
      %p406 = scmp.eq.s32.totalorder %s39, 3
      %p407 = por %p405, %p406
      %p408 = scmp.ne.s32.totalorder %s397, %s398
      %p409 = scmp.eq.s32.totalorder %s39, 0
      %p410 = por %p408, %p409
      %p411 = scmp.ne.s32.totalorder %s397, %s398
      %p412 = scmp.eq.s32.totalorder %s40, 3
      %p413 = por %p411, %p412
      %p415 = scmp.ne.s32.totalorder %s398, %s414
      %p416 = scmp.eq.s32.totalorder %s40, 0
      %p417 = por %p415, %p416
      %s418 = ssub.s32 %s41, %s53
      %p419 = scmp.eq.s32.totalorder %s418, 0
      %s421 = sadd.s32 %s420, 1
      %s422 = scalar_select %p419, %s420, %s421
      %p425 = pneg %p419
      %p426 = scmp.eq.s32.totalorder %s34, 3
      %p427 = por %p425, %p426
      %p428 = scmp.ne.s32.totalorder %s420, %s423
      %p429 = scmp.eq.s32.totalorder %s34, 0
      %p430 = por %p428, %p429
      %p431 = scmp.ne.s32.totalorder %s420, %s423
      %p432 = scmp.eq.s32.totalorder %s39, 3
      %p433 = por %p431, %p432
      %p434 = scmp.ne.s32.totalorder %s423, %s424
      %p435 = scmp.eq.s32.totalorder %s39, 0
      %p436 = por %p434, %p435
      %p437 = scmp.ne.s32.totalorder %s423, %s424
      %p438 = scmp.eq.s32.totalorder %s40, 3
      %p439 = por %p437, %p438
      %p441 = scmp.ne.s32.totalorder %s424, %s440
      %p442 = scmp.eq.s32.totalorder %s40, 0
      %p443 = por %p441, %p442
      %s444 = ssub.s32 %s41, %s53
      %p445 = scmp.eq.s32.totalorder %s444, 0
      %s447 = sadd.s32 %s446, 1
      %s448 = scalar_select %p445, %s446, %s447
      %p451 = pneg %p445
      %p452 = scmp.eq.s32.totalorder %s34, 3
      %p453 = por %p451, %p452
      %p454 = scmp.ne.s32.totalorder %s446, %s449
      %p455 = scmp.eq.s32.totalorder %s34, 0
      %p456 = por %p454, %p455
      %p457 = scmp.ne.s32.totalorder %s446, %s449
      %p458 = scmp.eq.s32.totalorder %s39, 3
      %p459 = por %p457, %p458
      %p460 = scmp.ne.s32.totalorder %s449, %s450
      %p461 = scmp.eq.s32.totalorder %s39, 0
      %p462 = por %p460, %p461
      %p463 = scmp.ne.s32.totalorder %s449, %s450
      %p464 = scmp.eq.s32.totalorder %s40, 3
      %p465 = por %p463, %p464
      %p467 = scmp.ne.s32.totalorder %s450, %s466
      %p468 = scmp.eq.s32.totalorder %s40, 0
      %p469 = por %p467, %p468
      %p470 = scmp.le.s32.totalorder 1, %s34
      %p471 = scmp.lt.s32.totalorder %s34, 5
      %p472 = pnand %p470, %p471
      %p473 = pneg %p472
      // Predicated region
      $region9: #{tpu_custom_call.1} parent=5 // pred_check
        _
      $region10: #{tpu_custom_call.1} parent=5 // pred_check_branch
        %475 = sbr.rel (%p472) target = $region12
      $region11: #{tpu_custom_call.1} parent=5 // pred_region
        %s476 = ssub.s32 %s34, 1
      $region12: #{tpu_custom_call.1} parent=5 // pred_fallthru
        _
      %p477 = scmp.lt.s32.totalorder %s34, 4
      // Predicated region
      $region13: #{tpu_custom_call.1} parent=5 // pred_check
        %p478 = pneg %p477
      $region14: #{tpu_custom_call.1} parent=5 // pred_check_branch
        %480 = sbr.rel (%p478) target = $region16
      $region15: #{tpu_custom_call.1} parent=5 // pred_region
        // Predicated region
        $region17: #{tpu_custom_call.1} parent=15 // pred_check
          %p481 = pneg %p66
        $region18: #{tpu_custom_call.1} parent=15 // pred_check_branch
          %483 = sbr.rel (%p481) target = $region20
        $region19: #{tpu_custom_call.1} parent=15 // pred_region
          %s484 = sand.u32 %s56, 1
          %s485 = scalar_lea.sflag [#allocation3], %s484
          %s486 = sand.u32 %s56, 1
          %s487 = smul.addr %s486, 8
          %s488 = scalar_lea.vmem [#allocation2], %s487
          %s490 = ssub.s32 128, 128
          %491 = vsyncadd %s485, %s490
          %s492 = smul.addr %s41, 128
          %s493 = scalar_lea.hbm %s0, %s492
          %s495 = sshll.u32 %s488, 4
          %s496 = int_to_ptr.vmem [resolvable:$true] %s495
          %498 = dma.hbm_to_vmem [thread:$0]  %s493, 128, %s496, %s485
        $region20: #{tpu_custom_call.1} parent=15 // pred_fallthru
          _
        // Predicated region
        $region21: #{tpu_custom_call.1} parent=15 // pred_check
          %p499 = pneg %p92
        $region22: #{tpu_custom_call.1} parent=15 // pred_check_branch
          %501 = sbr.rel (%p499) target = $region24
        $region23: #{tpu_custom_call.1} parent=15 // pred_region
          %s502 = sand.u32 %s82, 1
          %s503 = scalar_lea.sflag [#allocation6], %s502
          %s504 = sand.u32 %s82, 1
          %s505 = scalar_lea.vmem [#allocation5], %s504
          %s507 = ssub.s32 16, 16
          %508 = vsyncadd %s503, %s507
          %s509 = smul.addr %s41, 16
          %s510 = scalar_lea.hbm %s1, %s509
          %s512 = sshll.u32 %s505, 4
          %s513 = int_to_ptr.vmem [resolvable:$true] %s512
          %515 = dma.hbm_to_vmem [thread:$0]  %s510, 16, %s513, %s503
        $region24: #{tpu_custom_call.1} parent=15 // pred_fallthru
          _
        // Predicated region
        $region25: #{tpu_custom_call.1} parent=15 // pred_check
          %p516 = pneg %p118
        $region26: #{tpu_custom_call.1} parent=15 // pred_check_branch
          %518 = sbr.rel (%p516) target = $region28
        $region27: #{tpu_custom_call.1} parent=15 // pred_region
          %p519 = scmp.lt.s32.totalorder %s42, 1
          %s520 = scalar_select %p519, %s42, 1
          %s521 = smul.addr %s520, 4
          %s522 = smul.addr %s521, 4
          %s523 = scalar_lea.vmem %s2, %s522
        $region28: #{tpu_custom_call.1} parent=15 // pred_fallthru
          _
        // Predicated region
        $region29: #{tpu_custom_call.1} parent=15 // pred_check
          %p524 = pneg %p144
        $region30: #{tpu_custom_call.1} parent=15 // pred_check_branch
          %526 = sbr.rel (%p524) target = $region32
        $region31: #{tpu_custom_call.1} parent=15 // pred_region
          %p527 = scmp.lt.s32.totalorder %s42, 1
          %s528 = scalar_select %p527, %s42, 1
          %s529 = scalar_lea.vmem %s3, %s528
        $region32: #{tpu_custom_call.1} parent=15 // pred_fallthru
          _
        // Predicated region
        $region33: #{tpu_custom_call.1} parent=15 // pred_check
          %p530 = pneg %p170
        $region34: #{tpu_custom_call.1} parent=15 // pred_check_branch
          %532 = sbr.rel (%p530) target = $region36
        $region35: #{tpu_custom_call.1} parent=15 // pred_region
          %p533 = scmp.lt.s32.totalorder %s42, 1
          %s534 = scalar_select %p533, %s42, 1
          %s535 = smul.addr %s534, 4
          %s536 = smul.addr %s535, 4
          %s537 = scalar_lea.vmem %s4, %s536
        $region36: #{tpu_custom_call.1} parent=15 // pred_fallthru
          _
        // Predicated region
        $region37: #{tpu_custom_call.1} parent=15 // pred_check
          %p538 = pneg %p196
        $region38: #{tpu_custom_call.1} parent=15 // pred_check_branch
          %540 = sbr.rel (%p538) target = $region40
        $region39: #{tpu_custom_call.1} parent=15 // pred_region
          %p541 = scmp.lt.s32.totalorder %s42, 1
          %s542 = scalar_select %p541, %s42, 1
          %s543 = scalar_lea.vmem %s5, %s542
        $region40: #{tpu_custom_call.1} parent=15 // pred_fallthru
          _
        // Predicated region
        $region41: #{tpu_custom_call.1} parent=15 // pred_check
          %p544 = pneg %p222
        $region42: #{tpu_custom_call.1} parent=15 // pred_check_branch
          %546 = sbr.rel (%p544) target = $region44
        $region43: #{tpu_custom_call.1} parent=15 // pred_region
          %p547 = scmp.lt.s32.totalorder %s42, 1
          %s548 = scalar_select %p547, %s42, 1
          %s549 = scalar_lea.vmem %s6, %s548
        $region44: #{tpu_custom_call.1} parent=15 // pred_fallthru
          _
        // Predicated region
        $region45: #{tpu_custom_call.1} parent=15 // pred_check
          %p550 = pneg %p248
        $region46: #{tpu_custom_call.1} parent=15 // pred_check_branch
          %552 = sbr.rel (%p550) target = $region48
        $region47: #{tpu_custom_call.1} parent=15 // pred_region
          %p553 = scmp.lt.s32.totalorder %s42, 1
          %s554 = scalar_select %p553, %s42, 1
          %s555 = scalar_lea.vmem %s7, %s554
        $region48: #{tpu_custom_call.1} parent=15 // pred_fallthru
          _
        // Predicated region
        $region49: #{tpu_custom_call.1} parent=15 // pred_check
          %p556 = pneg %p274
        $region50: #{tpu_custom_call.1} parent=15 // pred_check_branch
          %558 = sbr.rel (%p556) target = $region52
        $region51: #{tpu_custom_call.1} parent=15 // pred_region
          %p559 = scmp.lt.s32.totalorder %s42, 1
          %s560 = scalar_select %p559, %s42, 1
          %s561 = smul.addr %s560, 4
          %s562 = smul.addr %s561, 4
          %s563 = scalar_lea.vmem %s8, %s562
        $region52: #{tpu_custom_call.1} parent=15 // pred_fallthru
          _
        // Predicated region
        $region53: #{tpu_custom_call.1} parent=15 // pred_check
          %p564 = pneg %p300
        $region54: #{tpu_custom_call.1} parent=15 // pred_check_branch
          %566 = sbr.rel (%p564) target = $region56
        $region55: #{tpu_custom_call.1} parent=15 // pred_region
          %p567 = scmp.lt.s32.totalorder %s42, 1
          %s568 = scalar_select %p567, %s42, 1
          %s569 = scalar_lea.vmem %s9, %s568
        $region56: #{tpu_custom_call.1} parent=15 // pred_fallthru
          _
        // Predicated region
        $region57: #{tpu_custom_call.1} parent=15 // pred_check
          %p570 = pneg %p326
        $region58: #{tpu_custom_call.1} parent=15 // pred_check_branch
          %572 = sbr.rel (%p570) target = $region60
        $region59: #{tpu_custom_call.1} parent=15 // pred_region
          %p573 = scmp.lt.s32.totalorder %s42, 1
          %s574 = scalar_select %p573, %s42, 1
          %s575 = smul.addr %s574, 8
          %s576 = smul.addr %s575, 4
          %s577 = scalar_lea.vmem %s10, %s576
        $region60: #{tpu_custom_call.1} parent=15 // pred_fallthru
          _
        // Predicated region
        $region61: #{tpu_custom_call.1} parent=15 // pred_check
          %p578 = pneg %p352
        $region62: #{tpu_custom_call.1} parent=15 // pred_check_branch
          %580 = sbr.rel (%p578) target = $region64
        $region63: #{tpu_custom_call.1} parent=15 // pred_region
          %p581 = scmp.lt.s32.totalorder %s42, 1
          %s582 = scalar_select %p581, %s42, 1
          %s583 = scalar_lea.vmem %s11, %s582
        $region64: #{tpu_custom_call.1} parent=15 // pred_fallthru
          _
        // Predicated region
        $region65: #{tpu_custom_call.1} parent=15 // pred_check
          %p584 = pneg %p378
        $region66: #{tpu_custom_call.1} parent=15 // pred_check_branch
          %586 = sbr.rel (%p584) target = $region68
        $region67: #{tpu_custom_call.1} parent=15 // pred_region
          %p587 = scmp.lt.s32.totalorder %s42, 1
          %s588 = scalar_select %p587, %s42, 1
          %s589 = scalar_lea.vmem %s12, %s588
        $region68: #{tpu_custom_call.1} parent=15 // pred_fallthru
          _
        // Predicated region
        $region69: #{tpu_custom_call.1} parent=15 // pred_check
          %p590 = pneg %p404
        $region70: #{tpu_custom_call.1} parent=15 // pred_check_branch
          %592 = sbr.rel (%p590) target = $region72
        $region71: #{tpu_custom_call.1} parent=15 // pred_region
          %p593 = scmp.lt.s32.totalorder %s42, 1
          %s594 = scalar_select %p593, %s42, 1
          %s595 = scalar_lea.vmem %s13, %s594
        $region72: #{tpu_custom_call.1} parent=15 // pred_fallthru
          _
      $region16: #{tpu_custom_call.1} parent=5 // pred_fallthru
        _
      %p596 = scmp.le.s32.totalorder 1, %s34
      %p597 = scmp.lt.s32.totalorder %s34, 5
      %p598 = pnand %p596, %p597
      %p599 = pneg %p598
      // Predicated region
      $region73: #{tpu_custom_call.1} parent=5 // pred_check
        _
      $region74: #{tpu_custom_call.1} parent=5 // pred_check_branch
        %601 = sbr.rel (%p598) target = $region76
      $region75: #{tpu_custom_call.1} parent=5 // pred_region
        %s602 = ssub.s32 %s34, 1
        %s603 = sand.u32 %s59, 1
        %s604 = scalar_lea.sflag [#allocation3], %s603
        %s605 = sand.u32 %s59, 1
        %s606 = smul.addr %s605, 8
        %s607 = scalar_lea.vmem [#allocation2], %s606
        // Predicated region
        $region77: #{tpu_custom_call.1} parent=75 // pred_check
          %p608 = pneg %p72
        $region78: #{tpu_custom_call.1} parent=75 // pred_check_branch
          %610 = sbr.rel (%p608) target = $region80
        $region79: #{tpu_custom_call.1} parent=75 // pred_region
          %611 = dma.done %s604, 128
        $region80: #{tpu_custom_call.1} parent=75 // pred_fallthru
          _
        %s612 = sand.u32 %s85, 1
        %s613 = scalar_lea.sflag [#allocation6], %s612
        %s614 = sand.u32 %s85, 1
        %s615 = scalar_lea.vmem [#allocation5], %s614
        // Predicated region
        $region81: #{tpu_custom_call.1} parent=75 // pred_check
          %p616 = pneg %p98
        $region82: #{tpu_custom_call.1} parent=75 // pred_check_branch
          %618 = sbr.rel (%p616) target = $region84
        $region83: #{tpu_custom_call.1} parent=75 // pred_region
          %619 = dma.done %s613, 16
        $region84: #{tpu_custom_call.1} parent=75 // pred_fallthru
          _
        %s620 = sand.u32 %s59, 1
        %s621 = scalar_lea.sflag [#allocation3], %s620
        %s622 = sand.u32 %s59, 1
        %s623 = smul.addr %s622, 8
        %s624 = scalar_lea.vmem [#allocation2], %s623
        %p625 = pneg %p72
        %p626 = pneg %p69
        %s627 = sand.u32 %s85, 1
        %s628 = scalar_lea.sflag [#allocation6], %s627
        %s629 = sand.u32 %s85, 1
        %s630 = scalar_lea.vmem [#allocation5], %s629
        %p631 = pneg %p98
        %p632 = pneg %p95
        %p633 = scmp.lt.s32.totalorder %s44, 1
        %s634 = scalar_select %p633, %s44, 1
        %s635 = smul.addr %s634, 4
        %s636 = smul.addr %s635, 4
        %s637 = scalar_lea.vmem %s2, %s636
        %p638 = pneg %p124
        %p639 = pneg %p121
        %p640 = scmp.lt.s32.totalorder %s44, 1
        %s641 = scalar_select %p640, %s44, 1
        %s642 = scalar_lea.vmem %s3, %s641
        %p643 = pneg %p150
        %p644 = pneg %p147
        %p645 = scmp.lt.s32.totalorder %s44, 1
        %s646 = scalar_select %p645, %s44, 1
        %s647 = smul.addr %s646, 4
        %s648 = smul.addr %s647, 4
        %s649 = scalar_lea.vmem %s4, %s648
        %p650 = pneg %p176
        %p651 = pneg %p173
        %p652 = scmp.lt.s32.totalorder %s44, 1
        %s653 = scalar_select %p652, %s44, 1
        %s654 = scalar_lea.vmem %s5, %s653
        %p655 = pneg %p202
        %p656 = pneg %p199
        %p657 = scmp.lt.s32.totalorder %s44, 1
        %s658 = scalar_select %p657, %s44, 1
        %s659 = scalar_lea.vmem %s6, %s658
        %p660 = pneg %p228
        %p661 = pneg %p225
        %p662 = scmp.lt.s32.totalorder %s44, 1
        %s663 = scalar_select %p662, %s44, 1
        %s664 = scalar_lea.vmem %s7, %s663
        %p665 = pneg %p254
        %p666 = pneg %p251
        %p667 = scmp.lt.s32.totalorder %s44, 1
        %s668 = scalar_select %p667, %s44, 1
        %s669 = smul.addr %s668, 4
        %s670 = smul.addr %s669, 4
        %s671 = scalar_lea.vmem %s8, %s670
        %p672 = pneg %p280
        %p673 = pneg %p277
        %p674 = scmp.lt.s32.totalorder %s44, 1
        %s675 = scalar_select %p674, %s44, 1
        %s676 = scalar_lea.vmem %s9, %s675
        %p677 = pneg %p306
        %p678 = pneg %p303
        %p679 = scmp.lt.s32.totalorder %s44, 1
        %s680 = scalar_select %p679, %s44, 1
        %s681 = smul.addr %s680, 8
        %s682 = smul.addr %s681, 4
        %s683 = scalar_lea.vmem %s10, %s682
        %p684 = pneg %p332
        %p685 = pneg %p329
        %p686 = scmp.lt.s32.totalorder %s44, 1
        %s687 = scalar_select %p686, %s44, 1
        %s688 = scalar_lea.vmem %s11, %s687
        %p689 = pneg %p358
        %p690 = pneg %p355
        %p691 = scmp.lt.s32.totalorder %s44, 1
        %s692 = scalar_select %p691, %s44, 1
        %s693 = scalar_lea.vmem %s12, %s692
        %p694 = pneg %p384
        %p695 = pneg %p381
        %p696 = scmp.lt.s32.totalorder %s44, 1
        %s697 = scalar_select %p696, %s44, 1
        %s698 = scalar_lea.vmem %s13, %s697
        %p699 = pneg %p410
        %p700 = pneg %p407
        %p701 = pneg %p436
        %p702 = pneg %p433
        %s703 = sand.u32 %s423, 1
        %s704 = scalar_lea.sflag [#allocation4], %s703
        %s705 = sand.u32 %s423, 1
        %s706 = smul.addr %s705, 8
        %s707 = scalar_lea.vmem [#allocation7], %s706
        %p708 = pneg %p462
        %p709 = pneg %p459
        %s710 = sand.u32 %s449, 1
        %s711 = scalar_lea.sflag [#allocation9], %s710
        %s712 = sand.u32 %s449, 1
        %s713 = smul.addr %s712, 16
        %s714 = scalar_lea.vmem [#allocation8], %s713
        %p715 = scmp.lt.s32.totalorder %s44, 1
        %s716 = scalar_select %p715, %s44, 1
        %s717 = smul.addr %s716, 4
        %s718 = smul.addr %s717, 4
        %s719 = scalar_lea.vmem %s2, %s718
        %p720 = scmp.lt.s32.totalorder %s44, 1
        %s721 = scalar_select %p720, %s44, 1
        %s722 = scalar_lea.vmem %s3, %s721
        %p723 = scmp.lt.s32.totalorder %s44, 1
        %s724 = scalar_select %p723, %s44, 1
        %s725 = smul.addr %s724, 4
        %s726 = smul.addr %s725, 4
        %s727 = scalar_lea.vmem %s4, %s726
        %p728 = scmp.lt.s32.totalorder %s44, 1
        %s729 = scalar_select %p728, %s44, 1
        %s730 = scalar_lea.vmem %s5, %s729
        %p731 = scmp.lt.s32.totalorder %s44, 1
        %s732 = scalar_select %p731, %s44, 1
        %s733 = scalar_lea.vmem %s6, %s732
        %p734 = scmp.lt.s32.totalorder %s44, 1
        %s735 = scalar_select %p734, %s44, 1
        %s736 = scalar_lea.vmem %s7, %s735
        %p737 = scmp.lt.s32.totalorder %s44, 1
        %s738 = scalar_select %p737, %s44, 1
        %s739 = smul.addr %s738, 4
        %s740 = smul.addr %s739, 4
        %s741 = scalar_lea.vmem %s8, %s740
        %p742 = scmp.lt.s32.totalorder %s44, 1
        %s743 = scalar_select %p742, %s44, 1
        %s744 = scalar_lea.vmem %s9, %s743
        %p745 = scmp.lt.s32.totalorder %s44, 1
        %s746 = scalar_select %p745, %s44, 1
        %s747 = smul.addr %s746, 8
        %s748 = smul.addr %s747, 4
        %s749 = scalar_lea.vmem %s10, %s748
        %p750 = scmp.lt.s32.totalorder %s44, 1
        %s751 = scalar_select %p750, %s44, 1
        %s752 = scalar_lea.vmem %s11, %s751
        %p753 = scmp.lt.s32.totalorder %s44, 1
        %s754 = scalar_select %p753, %s44, 1
        %s755 = scalar_lea.vmem %s12, %s754
        %p756 = scmp.lt.s32.totalorder %s44, 1
        %s757 = scalar_select %p756, %s44, 1
        %s758 = scalar_lea.vmem %s13, %s757
        %p760 = scmp.eq.s32.totalorder %s44, 0
        // Predicated region
        $region85: #{tpu_custom_call.1} parent=75 // pred_check
          %p761 = pneg %p760
        $region86: #{tpu_custom_call.1} parent=75 // pred_check_branch
          %763 = sbr.rel (%p761) target = $region88
        $region87: #{tpu_custom_call.1} parent=75 // pred_region
          %v764 = vld [vmem:[%s607] sm:$0xff]
          %vm765 = vcmask 261120
          %766 = vst.msk [vmem:[%s707] sm:$0xff] %vm765, %v764
        $region88: #{tpu_custom_call.1} parent=75 // pred_fallthru
          _
        %v767 = vld [vmem:[%s707] sm:$0xff]
        %v768 = vpack.c.bf16 %v767, %v767
        %v769 = vld [vmem:[%s719] sm:$0xf]
        %v770 = vld [vmem:[%s719 + $0x4] sm:$0xf]
        %v771 = vld [vmem:[%s719 + $0x8] sm:$0xf]
        %v772 = vld [vmem:[%s719 + $0xc] sm:$0xf]
        %v773 = vld [vmem:[%s722] sm:$0x1]
        %v775 = vlaneseq
        %v776 = vshrl.u32 %v775, 7
        %v777 = vsub.s32 0, %v776
        %v778 = vrot.slane %v773, %v777
        %v784 = vunpack.c.l.b16 %v769
        %v785 = vunpack.c.l.b16 %v770
        %v786 = vunpack.c.l.b16 %v771
        %v787 = vunpack.c.l.b16 %v772
        %v788 = vpack.c.b16 %v785, %v784
        %v789 = vpack.c.b16 %v787, %v786
        %vm792 = vcmask 261120
        %v794 = vsel %vm792, %v768, 0
        %796 = vmatprep.subr.bf16.mxu0 0
        %797 = vmatpush1.bf16.msra.mxu0 0
        %798 = vmatprep.subr.bf16.mxu0 0
        %799 = vmatpush1.bf16.msra.mxu0 0
        %800 = vmatprep.subr.bf16.mxu0 0
        %801 = vmatpush1.bf16.msra.mxu0 0
        %802 = vmatprep.subr.bf16.mxu0 0
        %803 = vmatpush1.bf16.msra.mxu0 0
        %804 = vmatprep.subr.bf16.mxu0 0
        %805 = vmatpush1.bf16.msra.mxu0 0
        %806 = vmatprep.subr.bf16.mxu0 0
        %807 = vmatpush1.bf16.msra.mxu0 0
        %808 = vmatprep.subr.bf16.mxu0 0
        %809 = vmatpush1.bf16.msra.mxu0 %v789
        %810 = vmatprep.subr.bf16.mxu0 0
        %811 = vmatpush1.bf16.msra.mxu0 %v788
        %812 = vmatprep.subr.bf16.mxu0 0
        %813 = vmatpush2.bf16.msra.mxu0 0
        %814 = vmatprep.subr.bf16.mxu0 0
        %815 = vmatpush2.bf16.msra.mxu0 0
        %816 = vmatprep.subr.bf16.mxu0 0
        %817 = vmatpush2.bf16.msra.mxu0 0
        %818 = vmatprep.subr.bf16.mxu0 0
        %819 = vmatpush2.bf16.msra.mxu0 0
        %820 = vmatprep.subr.bf16.mxu0 0
        %821 = vmatpush2.bf16.msra.mxu0 0
        %822 = vmatprep.subr.bf16.mxu0 0
        %823 = vmatpush2.bf16.msra.mxu0 0
        %824 = vmatprep.subr.bf16.mxu0 0
        %825 = vmatpush2.bf16.msra.mxu0 0
        %826 = vmatprep.subr.bf16.mxu0 0
        %827 = vmatpush2.bf16.msra.mxu0 0
        %828 = vmatprep.mubr.bf16.mxu0 0
        %829 = vmatmul.mubr.bf16.gmra.mxu0 %v794
        %v830 = vpop.f32.mrf.mxu0
        %v831 = vadd.f32 %v778, %v830
        %v832 = vpop.f32.mrf.mxu0
        %v833 = vpop.f32.mrf.mxu0
        %v834 = vpop.f32.mrf.mxu0
        %835 = vdwg.mxu0
        %v836 = vmul.f32 %v831, 0.35355338
        %v837 = vpack.c.bf16 %v836, %v836
        %v838 = vpack.c.bf16 %v831, %v831
        %840 = vrot.lane.b32.xlu0 %v837, 120
        %v841 = vpop.permute.xlu0 %840
        %842 = vrot.lane.b32.xlu0 %v837, 112
        %v843 = vpop.permute.xlu0 %842
        %844 = vrot.lane.b32.xlu0 %v837, 104
        %v845 = vpop.permute.xlu0 %844
        %847 = vrot.lane.b32.xlu0 %v838, 120
        %v848 = vpop.permute.xlu0 %847
        %849 = vrot.lane.b32.xlu0 %v838, 112
        %v850 = vpop.permute.xlu0 %849
        %851 = vrot.lane.b32.xlu0 %v838, 104
        %v852 = vpop.permute.xlu0 %851
        %v853 = vld [vmem:[%s615] sm:$0x1]
        %vm854 = vcmp.gt.f32.partialorder %v853, 0.5
        %v855 = vsel %vm854, 0.0, -1e+10
        %v857 = vlaneseq
        %v858 = vshrl.u32 %v857, 7
        %v859 = vsub.s32 0, %v858
        %v860 = vrot.slane %v855, %v859
        %862 = vrot.lane.b32.xlu0 %v838, 96
        %v863 = vpop.permute.xlu0 %862
        %vm864 = vcmask 64512
        %v866 = vsel %vm864, %v837, 0
        %v869 = vsel %vm864, %v863, 0
        %871 = vmatprep.subr.bf16.mxu0 0
        %872 = vmatpush1.bf16.xpose.msra.mxu0 0
        %873 = vmatprep.subr.bf16.mxu0 0
        %874 = vmatpush1.bf16.xpose.msra.mxu0 0
        %875 = vmatprep.subr.bf16.mxu0 0
        %876 = vmatpush1.bf16.xpose.msra.mxu0 0
        %877 = vmatprep.subr.bf16.mxu0 0
        %878 = vmatpush1.bf16.xpose.msra.mxu0 0
        %879 = vmatprep.subr.bf16.mxu0 0
        %880 = vmatpush1.bf16.xpose.msra.mxu0 0
        %881 = vmatprep.subr.bf16.mxu0 0
        %882 = vmatpush1.bf16.xpose.msra.mxu0 0
        %883 = vmatprep.subr.bf16.mxu0 0
        %884 = vmatpush1.bf16.xpose.msra.mxu0 0
        %885 = vmatprep.subr.bf16.mxu0 0
        %886 = vmatpush1.bf16.xpose.msra.mxu0 %v869
        %887 = vmatprep.subr.bf16.mxu0 0
        %888 = vmatpush2.bf16.xpose.msra.mxu0 0
        %889 = vmatprep.subr.bf16.mxu0 0
        %890 = vmatpush2.bf16.xpose.msra.mxu0 0
        %891 = vmatprep.subr.bf16.mxu0 0
        %892 = vmatpush2.bf16.xpose.msra.mxu0 0
        %893 = vmatprep.subr.bf16.mxu0 0
        %894 = vmatpush2.bf16.xpose.msra.mxu0 0
        %895 = vmatprep.subr.bf16.mxu0 0
        %896 = vmatpush2.bf16.xpose.msra.mxu0 0
        %897 = vmatprep.subr.bf16.mxu0 0
        %898 = vmatpush2.bf16.xpose.msra.mxu0 0
        %899 = vmatprep.subr.bf16.mxu0 0
        %900 = vmatpush2.bf16.xpose.msra.mxu0 0
        %901 = vmatprep.subr.bf16.mxu0 0
        %902 = vmatpush2.bf16.xpose.msra.mxu0 0
        %903 = vmatprep.mubr.bf16.mxu0 0
        %904 = vmatmul.mubr.bf16.gmra.mxu0 %v866
        %v905 = vpop.f32.mrf.mxu0
        %v906 = vadd.f32 %v860, %v905
        %v907 = vpop.f32.mrf.mxu0
        %v908 = vpop.f32.mrf.mxu0
        %v909 = vpop.f32.mrf.mxu0
        %910 = vdwg.mxu0
        %911 = vrot.lane.b32.xlu0 %v848, 96
        %v912 = vpop.permute.xlu0 %911
        %v914 = vsel %vm864, %v841, 0
        %v917 = vsel %vm864, %v912, 0
        %919 = vmatprep.subr.bf16.mxu0 0
        %920 = vmatpush1.bf16.xpose.msra.mxu0 0
        %921 = vmatprep.subr.bf16.mxu0 0
        %922 = vmatpush1.bf16.xpose.msra.mxu0 0
        %923 = vmatprep.subr.bf16.mxu0 0
        %924 = vmatpush1.bf16.xpose.msra.mxu0 0
        %925 = vmatprep.subr.bf16.mxu0 0
        %926 = vmatpush1.bf16.xpose.msra.mxu0 0
        %927 = vmatprep.subr.bf16.mxu0 0
        %928 = vmatpush1.bf16.xpose.msra.mxu0 0
        %929 = vmatprep.subr.bf16.mxu0 0
        %930 = vmatpush1.bf16.xpose.msra.mxu0 0
        %931 = vmatprep.subr.bf16.mxu0 0
        %932 = vmatpush1.bf16.xpose.msra.mxu0 0
        %933 = vmatprep.subr.bf16.mxu0 0
        %934 = vmatpush1.bf16.xpose.msra.mxu0 %v917
        %935 = vmatprep.subr.bf16.mxu0 0
        %936 = vmatpush2.bf16.xpose.msra.mxu0 0
        %937 = vmatprep.subr.bf16.mxu0 0
        %938 = vmatpush2.bf16.xpose.msra.mxu0 0
        %939 = vmatprep.subr.bf16.mxu0 0
        %940 = vmatpush2.bf16.xpose.msra.mxu0 0
        %941 = vmatprep.subr.bf16.mxu0 0
        %942 = vmatpush2.bf16.xpose.msra.mxu0 0
        %943 = vmatprep.subr.bf16.mxu0 0
        %944 = vmatpush2.bf16.xpose.msra.mxu0 0
        %945 = vmatprep.subr.bf16.mxu0 0
        %946 = vmatpush2.bf16.xpose.msra.mxu0 0
        %947 = vmatprep.subr.bf16.mxu0 0
        %948 = vmatpush2.bf16.xpose.msra.mxu0 0
        %949 = vmatprep.subr.bf16.mxu0 0
        %950 = vmatpush2.bf16.xpose.msra.mxu0 0
        %951 = vmatprep.mubr.bf16.mxu0 0
        %952 = vmatmul.mubr.bf16.gmra.mxu0 %v914
        %v953 = vpop.f32.mrf.mxu0
        %v954 = vadd.f32 %v860, %v953
        %v955 = vpop.f32.mrf.mxu0
        %v956 = vpop.f32.mrf.mxu0
        %v957 = vpop.f32.mrf.mxu0
        %958 = vdwg.mxu0
        %959 = vrot.lane.b32.xlu0 %v850, 96
        %v960 = vpop.permute.xlu0 %959
        %v962 = vsel %vm864, %v843, 0
        %v965 = vsel %vm864, %v960, 0
        %967 = vmatprep.subr.bf16.mxu0 0
        %968 = vmatpush1.bf16.xpose.msra.mxu0 0
        %969 = vmatprep.subr.bf16.mxu0 0
        %970 = vmatpush1.bf16.xpose.msra.mxu0 0
        %971 = vmatprep.subr.bf16.mxu0 0
        %972 = vmatpush1.bf16.xpose.msra.mxu0 0
        %973 = vmatprep.subr.bf16.mxu0 0
        %974 = vmatpush1.bf16.xpose.msra.mxu0 0
        %975 = vmatprep.subr.bf16.mxu0 0
        %976 = vmatpush1.bf16.xpose.msra.mxu0 0
        %977 = vmatprep.subr.bf16.mxu0 0
        %978 = vmatpush1.bf16.xpose.msra.mxu0 0
        %979 = vmatprep.subr.bf16.mxu0 0
        %980 = vmatpush1.bf16.xpose.msra.mxu0 0
        %981 = vmatprep.subr.bf16.mxu0 0
        %982 = vmatpush1.bf16.xpose.msra.mxu0 %v965
        %983 = vmatprep.subr.bf16.mxu0 0
        %984 = vmatpush2.bf16.xpose.msra.mxu0 0
        %985 = vmatprep.subr.bf16.mxu0 0
        %986 = vmatpush2.bf16.xpose.msra.mxu0 0
        %987 = vmatprep.subr.bf16.mxu0 0
        %988 = vmatpush2.bf16.xpose.msra.mxu0 0
        %989 = vmatprep.subr.bf16.mxu0 0
        %990 = vmatpush2.bf16.xpose.msra.mxu0 0
        %991 = vmatprep.subr.bf16.mxu0 0
        %992 = vmatpush2.bf16.xpose.msra.mxu0 0
        %993 = vmatprep.subr.bf16.mxu0 0
        %994 = vmatpush2.bf16.xpose.msra.mxu0 0
        %995 = vmatprep.subr.bf16.mxu0 0
        %996 = vmatpush2.bf16.xpose.msra.mxu0 0
        %997 = vmatprep.subr.bf16.mxu0 0
        %998 = vmatpush2.bf16.xpose.msra.mxu0 0
        %999 = vmatprep.mubr.bf16.mxu0 0
        %1000 = vmatmul.mubr.bf16.gmra.mxu0 %v962
        %v1001 = vpop.f32.mrf.mxu0
        %v1002 = vadd.f32 %v860, %v1001
        %v1003 = vpop.f32.mrf.mxu0
        %v1004 = vpop.f32.mrf.mxu0
        %v1005 = vpop.f32.mrf.mxu0
        %1006 = vdwg.mxu0
        %1007 = vrot.lane.b32.xlu0 %v852, 96
        %v1008 = vpop.permute.xlu0 %1007
        %v1010 = vsel %vm864, %v845, 0
        %v1013 = vsel %vm864, %v1008, 0
        %1015 = vmatprep.subr.bf16.mxu0 0
        %1016 = vmatpush1.bf16.xpose.msra.mxu0 0
        %1017 = vmatprep.subr.bf16.mxu0 0
        %1018 = vmatpush1.bf16.xpose.msra.mxu0 0
        %1019 = vmatprep.subr.bf16.mxu0 0
        %1020 = vmatpush1.bf16.xpose.msra.mxu0 0
        %1021 = vmatprep.subr.bf16.mxu0 0
        %1022 = vmatpush1.bf16.xpose.msra.mxu0 0
        %1023 = vmatprep.subr.bf16.mxu0 0
        %1024 = vmatpush1.bf16.xpose.msra.mxu0 0
        %1025 = vmatprep.subr.bf16.mxu0 0
        %1026 = vmatpush1.bf16.xpose.msra.mxu0 0
        %1027 = vmatprep.subr.bf16.mxu0 0
        %1028 = vmatpush1.bf16.xpose.msra.mxu0 0
        %1029 = vmatprep.subr.bf16.mxu0 0
        %1030 = vmatpush1.bf16.xpose.msra.mxu0 %v1013
        %1031 = vmatprep.subr.bf16.mxu0 0
        %1032 = vmatpush2.bf16.xpose.msra.mxu0 0
        %1033 = vmatprep.subr.bf16.mxu0 0
        %1034 = vmatpush2.bf16.xpose.msra.mxu0 0
        %1035 = vmatprep.subr.bf16.mxu0 0
        %1036 = vmatpush2.bf16.xpose.msra.mxu0 0
        %1037 = vmatprep.subr.bf16.mxu0 0
        %1038 = vmatpush2.bf16.xpose.msra.mxu0 0
        %1039 = vmatprep.subr.bf16.mxu0 0
        %1040 = vmatpush2.bf16.xpose.msra.mxu0 0
        %1041 = vmatprep.subr.bf16.mxu0 0
        %1042 = vmatpush2.bf16.xpose.msra.mxu0 0
        %1043 = vmatprep.subr.bf16.mxu0 0
        %1044 = vmatpush2.bf16.xpose.msra.mxu0 0
        %1045 = vmatprep.subr.bf16.mxu0 0
        %1046 = vmatpush2.bf16.xpose.msra.mxu0 0
        %1047 = vmatprep.mubr.bf16.mxu0 0
        %1048 = vmatmul.mubr.bf16.gmra.mxu0 %v1010
        %v1049 = vpop.f32.mrf.mxu0
        %v1050 = vadd.f32 %v860, %v1049
        %v1051 = vpop.f32.mrf.mxu0
        %v1052 = vpop.f32.mrf.mxu0
        %v1053 = vpop.f32.mrf.mxu0
        %1054 = vdwg.mxu0
        %v1055 = vsel %vm864, %v906, -inf
        %1056 = vmax.xlane.f32.xlu0 %v1055
        %v1057 = vpop.xlane.xlu0 %1056
        %v1058 = vsel %vm864, %v954, -inf
        %1059 = vmax.xlane.f32.xlu0 %v1058
        %v1060 = vpop.xlane.xlu0 %1059
        %v1061 = vsel %vm864, %v1002, -inf
        %1062 = vmax.xlane.f32.xlu0 %v1061
        %v1063 = vpop.xlane.xlu0 %1062
        %v1064 = vsel %vm864, %v1050, -inf
        %1065 = vmax.xlane.f32.xlu0 %v1064
        %v1066 = vpop.xlane.xlu0 %1065
        %v1067 = vsub.f32 %v906, %v1057
        %v1068 = vsub.f32 %v954, %v1060
        %v1069 = vsub.f32 %v1002, %v1063
        %v1070 = vsub.f32 %v1050, %v1066
        %v1071 = vmul.f32 %v1067, 1.442695
        %v1072 = vpow.pop %v1071
        %v1073 = vmul.f32 %v1068, 1.442695
        %v1074 = vpow.pop %v1073
        %v1075 = vmul.f32 %v1069, 1.442695
        %v1076 = vpow.pop %v1075
        %v1077 = vmul.f32 %v1070, 1.442695
        %v1078 = vpow.pop %v1077
        %v1079 = vsel %vm864, %v1072, 0.0
        %1080 = vadd.xlane.f32.xlu0 %v1079
        %v1081 = vpop.xlane.xlu0 %1080
        %v1082 = vsel %vm864, %v1074, 0.0
        %1083 = vadd.xlane.f32.xlu0 %v1082
        %v1084 = vpop.xlane.xlu0 %1083
        %v1085 = vsel %vm864, %v1076, 0.0
        %1086 = vadd.xlane.f32.xlu0 %v1085
        %v1087 = vpop.xlane.xlu0 %1086
        %v1088 = vsel %vm864, %v1078, 0.0
        %1089 = vadd.xlane.f32.xlu0 %v1088
        %v1090 = vpop.xlane.xlu0 %1089
        %v1091 = vrcp.pop %v1081
        %v1092 = vrcp.pop %v1084
        %v1093 = vrcp.pop %v1087
        %v1094 = vrcp.pop %v1090
        %v1095 = vmul.f32 %v1072, %v1091
        %v1096 = vmul.f32 %v1074, %v1092
        %v1097 = vmul.f32 %v1076, %v1093
        %v1098 = vmul.f32 %v1078, %v1094
        %p1099 = scmp.eq.s32.totalorder %s44, 1
        // Predicated region
        $region89: #{tpu_custom_call.1} parent=75 // pred_check
          %p1100 = pneg %p1099
        $region90: #{tpu_custom_call.1} parent=75 // pred_check_branch
          %1102 = sbr.rel (%p1100) target = $region92
        $region91: #{tpu_custom_call.1} parent=75 // pred_region
          %v1103 = vpack.c.bf16 %v1095, %v1095
          %v1104 = vpack.c.bf16 %v1096, %v1096
          %v1105 = vpack.c.bf16 %v1097, %v1097
          %v1106 = vpack.c.bf16 %v1098, %v1098
          %vm1107 = vcmask 60416
          %1108 = vst.msk [vmem:[%s714] sm:$0xf] %vm1107, %v1103
          %1109 = vst.msk [vmem:[%s714 + $0x4] sm:$0xf] %vm1107, %v1104
          %1110 = vst.msk [vmem:[%s714 + $0x8] sm:$0xf] %vm1107, %v1105
          %1111 = vst.msk [vmem:[%s714 + $0xc] sm:$0xf] %vm1107, %v1106
        $region92: #{tpu_custom_call.1} parent=75 // pred_fallthru
          _
        %v1112 = vpack.c.bf16 %v1095, %v1095
        %v1113 = vpack.c.bf16 %v1096, %v1096
        %v1114 = vpack.c.bf16 %v1097, %v1097
        %v1115 = vpack.c.bf16 %v1098, %v1098
        %1116 = vrot.lane.b32.xlu0 %v838, 64
        %v1117 = vpop.permute.xlu0 %1116
        %v1119 = vsel %vm864, %v1112, 0
        %vm1121 = vcmask 1043456
        %v1123 = vsel %vm1121, %v1117, 0
        %1125 = vmatprep.subr.bf16.mxu0 0
        %1126 = vmatpush1.bf16.msra.mxu0 0
        %1127 = vmatprep.subr.bf16.mxu0 0
        %1128 = vmatpush1.bf16.msra.mxu0 0
        %1129 = vmatprep.subr.bf16.mxu0 0
        %1130 = vmatpush1.bf16.msra.mxu0 0
        %1131 = vmatprep.subr.bf16.mxu0 0
        %1132 = vmatpush1.bf16.msra.mxu0 0
        %1133 = vmatprep.subr.bf16.mxu0 0
        %1134 = vmatpush1.bf16.msra.mxu0 0
        %1135 = vmatprep.subr.bf16.mxu0 0
        %1136 = vmatpush1.bf16.msra.mxu0 0
        %1137 = vmatprep.subr.bf16.mxu0 0
        %1138 = vmatpush1.bf16.msra.mxu0 0
        %1139 = vmatprep.subr.bf16.mxu0 0
        %1140 = vmatpush1.bf16.msra.mxu0 %v1123
        %1141 = vmatprep.subr.bf16.mxu0 0
        %1142 = vmatpush2.bf16.msra.mxu0 0
        %1143 = vmatprep.subr.bf16.mxu0 0
        %1144 = vmatpush2.bf16.msra.mxu0 0
        %1145 = vmatprep.subr.bf16.mxu0 0
        %1146 = vmatpush2.bf16.msra.mxu0 0
        %1147 = vmatprep.subr.bf16.mxu0 0
        %1148 = vmatpush2.bf16.msra.mxu0 0
        %1149 = vmatprep.subr.bf16.mxu0 0
        %1150 = vmatpush2.bf16.msra.mxu0 0
        %1151 = vmatprep.subr.bf16.mxu0 0
        %1152 = vmatpush2.bf16.msra.mxu0 0
        %1153 = vmatprep.subr.bf16.mxu0 0
        %1154 = vmatpush2.bf16.msra.mxu0 0
        %1155 = vmatprep.subr.bf16.mxu0 0
        %1156 = vmatpush2.bf16.msra.mxu0 0
        %1157 = vmatprep.mubr.bf16.mxu0 0
        %1158 = vmatmul.mubr.bf16.gmra.mxu0 %v1119
        %v1159 = vpop.f32.mrf.mxu0
        %v1160 = vadd.f32 0.0, %v1159
        %v1161 = vpop.f32.mrf.mxu0
        %v1162 = vpop.f32.mrf.mxu0
        %v1163 = vpop.f32.mrf.mxu0
        %1164 = vdwg.mxu0
        %1165 = vrot.lane.b32.xlu0 %v848, 64
        %v1166 = vpop.permute.xlu0 %1165
        %v1168 = vsel %vm864, %v1113, 0
        %v1171 = vsel %vm1121, %v1166, 0
        %1173 = vmatprep.subr.bf16.mxu0 0
        %1174 = vmatpush1.bf16.msra.mxu0 0
        %1175 = vmatprep.subr.bf16.mxu0 0
        %1176 = vmatpush1.bf16.msra.mxu0 0
        %1177 = vmatprep.subr.bf16.mxu0 0
        %1178 = vmatpush1.bf16.msra.mxu0 0
        %1179 = vmatprep.subr.bf16.mxu0 0
        %1180 = vmatpush1.bf16.msra.mxu0 0
        %1181 = vmatprep.subr.bf16.mxu0 0
        %1182 = vmatpush1.bf16.msra.mxu0 0
        %1183 = vmatprep.subr.bf16.mxu0 0
        %1184 = vmatpush1.bf16.msra.mxu0 0
        %1185 = vmatprep.subr.bf16.mxu0 0
        %1186 = vmatpush1.bf16.msra.mxu0 0
        %1187 = vmatprep.subr.bf16.mxu0 0
        %1188 = vmatpush1.bf16.msra.mxu0 %v1171
        %1189 = vmatprep.subr.bf16.mxu0 0
        %1190 = vmatpush2.bf16.msra.mxu0 0
        %1191 = vmatprep.subr.bf16.mxu0 0
        %1192 = vmatpush2.bf16.msra.mxu0 0
        %1193 = vmatprep.subr.bf16.mxu0 0
        %1194 = vmatpush2.bf16.msra.mxu0 0
        %1195 = vmatprep.subr.bf16.mxu0 0
        %1196 = vmatpush2.bf16.msra.mxu0 0
        %1197 = vmatprep.subr.bf16.mxu0 0
        %1198 = vmatpush2.bf16.msra.mxu0 0
        %1199 = vmatprep.subr.bf16.mxu0 0
        %1200 = vmatpush2.bf16.msra.mxu0 0
        %1201 = vmatprep.subr.bf16.mxu0 0
        %1202 = vmatpush2.bf16.msra.mxu0 0
        %1203 = vmatprep.subr.bf16.mxu0 0
        %1204 = vmatpush2.bf16.msra.mxu0 0
        %1205 = vmatprep.mubr.bf16.mxu0 0
        %1206 = vmatmul.mubr.bf16.gmra.mxu0 %v1168
        %v1207 = vpop.f32.mrf.mxu0
        %v1208 = vadd.f32 0.0, %v1207
        %v1209 = vpop.f32.mrf.mxu0
        %v1210 = vpop.f32.mrf.mxu0
        %v1211 = vpop.f32.mrf.mxu0
        %1212 = vdwg.mxu0
        %1213 = vrot.lane.b32.xlu0 %v850, 64
        %v1214 = vpop.permute.xlu0 %1213
        %v1216 = vsel %vm864, %v1114, 0
        %v1219 = vsel %vm1121, %v1214, 0
        %1221 = vmatprep.subr.bf16.mxu0 0
        %1222 = vmatpush1.bf16.msra.mxu0 0
        %1223 = vmatprep.subr.bf16.mxu0 0
        %1224 = vmatpush1.bf16.msra.mxu0 0
        %1225 = vmatprep.subr.bf16.mxu0 0
        %1226 = vmatpush1.bf16.msra.mxu0 0
        %1227 = vmatprep.subr.bf16.mxu0 0
        %1228 = vmatpush1.bf16.msra.mxu0 0
        %1229 = vmatprep.subr.bf16.mxu0 0
        %1230 = vmatpush1.bf16.msra.mxu0 0
        %1231 = vmatprep.subr.bf16.mxu0 0
        %1232 = vmatpush1.bf16.msra.mxu0 0
        %1233 = vmatprep.subr.bf16.mxu0 0
        %1234 = vmatpush1.bf16.msra.mxu0 0
        %1235 = vmatprep.subr.bf16.mxu0 0
        %1236 = vmatpush1.bf16.msra.mxu0 %v1219
        %1237 = vmatprep.subr.bf16.mxu0 0
        %1238 = vmatpush2.bf16.msra.mxu0 0
        %1239 = vmatprep.subr.bf16.mxu0 0
        %1240 = vmatpush2.bf16.msra.mxu0 0
        %1241 = vmatprep.subr.bf16.mxu0 0
        %1242 = vmatpush2.bf16.msra.mxu0 0
        %1243 = vmatprep.subr.bf16.mxu0 0
        %1244 = vmatpush2.bf16.msra.mxu0 0
        %1245 = vmatprep.subr.bf16.mxu0 0
        %1246 = vmatpush2.bf16.msra.mxu0 0
        %1247 = vmatprep.subr.bf16.mxu0 0
        %1248 = vmatpush2.bf16.msra.mxu0 0
        %1249 = vmatprep.subr.bf16.mxu0 0
        %1250 = vmatpush2.bf16.msra.mxu0 0
        %1251 = vmatprep.subr.bf16.mxu0 0
        %1252 = vmatpush2.bf16.msra.mxu0 0
        %1253 = vmatprep.mubr.bf16.mxu0 0
        %1254 = vmatmul.mubr.bf16.gmra.mxu0 %v1216
        %v1255 = vpop.f32.mrf.mxu0
        %v1256 = vadd.f32 0.0, %v1255
        %v1257 = vpop.f32.mrf.mxu0
        %v1258 = vpop.f32.mrf.mxu0
        %v1259 = vpop.f32.mrf.mxu0
        %1260 = vdwg.mxu0
        %1261 = vrot.lane.b32.xlu0 %v852, 64
        %v1262 = vpop.permute.xlu0 %1261
        %v1264 = vsel %vm864, %v1115, 0
        %v1267 = vsel %vm1121, %v1262, 0
        %1269 = vmatprep.subr.bf16.mxu0 0
        %1270 = vmatpush1.bf16.msra.mxu0 0
        %1271 = vmatprep.subr.bf16.mxu0 0
        %1272 = vmatpush1.bf16.msra.mxu0 0
        %1273 = vmatprep.subr.bf16.mxu0 0
        %1274 = vmatpush1.bf16.msra.mxu0 0
        %1275 = vmatprep.subr.bf16.mxu0 0
        %1276 = vmatpush1.bf16.msra.mxu0 0
        %1277 = vmatprep.subr.bf16.mxu0 0
        %1278 = vmatpush1.bf16.msra.mxu0 0
        %1279 = vmatprep.subr.bf16.mxu0 0
        %1280 = vmatpush1.bf16.msra.mxu0 0
        %1281 = vmatprep.subr.bf16.mxu0 0
        %1282 = vmatpush1.bf16.msra.mxu0 0
        %1283 = vmatprep.subr.bf16.mxu0 0
        %1284 = vmatpush1.bf16.msra.mxu0 %v1267
        %1285 = vmatprep.subr.bf16.mxu0 0
        %1286 = vmatpush2.bf16.msra.mxu0 0
        %1287 = vmatprep.subr.bf16.mxu0 0
        %1288 = vmatpush2.bf16.msra.mxu0 0
        %1289 = vmatprep.subr.bf16.mxu0 0
        %1290 = vmatpush2.bf16.msra.mxu0 0
        %1291 = vmatprep.subr.bf16.mxu0 0
        %1292 = vmatpush2.bf16.msra.mxu0 0
        %1293 = vmatprep.subr.bf16.mxu0 0
        %1294 = vmatpush2.bf16.msra.mxu0 0
        %1295 = vmatprep.subr.bf16.mxu0 0
        %1296 = vmatpush2.bf16.msra.mxu0 0
        %1297 = vmatprep.subr.bf16.mxu0 0
        %1298 = vmatpush2.bf16.msra.mxu0 0
        %1299 = vmatprep.subr.bf16.mxu0 0
        %1300 = vmatpush2.bf16.msra.mxu0 0
        %1301 = vmatprep.mubr.bf16.mxu0 0
        %1302 = vmatmul.mubr.bf16.gmra.mxu0 %v1264
        %v1303 = vpop.f32.mrf.mxu0
        %v1304 = vadd.f32 0.0, %v1303
        %v1305 = vpop.f32.mrf.mxu0
        %v1306 = vpop.f32.mrf.mxu0
        %v1307 = vpop.f32.mrf.mxu0
        %1308 = vdwg.mxu0
        %1310 = vrot.lane.b32.xlu0 %v1208, 8
        %v1311 = vpop.permute.xlu0 %1310
        %1314 = vrot.lane.b32.xlu0 %v1256, 16
        %v1315 = vpop.permute.xlu0 %1314
        %1318 = vrot.lane.b32.xlu0 %v1304, 24
        %v1319 = vpop.permute.xlu0 %1318
        %v1321 = vsel %vm864, %v1160, %v1311
        %vm1322 = vcmask 130048
        %v1323 = vsel %vm1322, %v1321, %v1315
        %vm1324 = vcmask 195584
        %v1325 = vsel %vm1324, %v1323, %v1319
        %v1326 = vpack.c.bf16 %v1325, %v1325
        %v1327 = vld [vmem:[%s727] sm:$0xf]
        %v1328 = vld [vmem:[%s727 + $0x4] sm:$0xf]
        %v1329 = vld [vmem:[%s727 + $0x8] sm:$0xf]
        %v1330 = vld [vmem:[%s727 + $0xc] sm:$0xf]
        %v1331 = vld [vmem:[%s730] sm:$0x1]
        %v1333 = vlaneseq
        %v1334 = vshrl.u32 %v1333, 7
        %v1335 = vsub.s32 0, %v1334
        %v1336 = vrot.slane %v1331, %v1335
        %v1342 = vunpack.c.l.b16 %v1327
        %v1343 = vunpack.c.l.b16 %v1328
        %v1344 = vunpack.c.l.b16 %v1329
        %v1345 = vunpack.c.l.b16 %v1330
        %v1346 = vpack.c.b16 %v1343, %v1342
        %v1347 = vpack.c.b16 %v1345, %v1344
        %v1351 = vsel %vm792, %v1326, 0
        %1353 = vmatprep.subr.bf16.mxu0 0
        %1354 = vmatpush1.bf16.msra.mxu0 0
        %1355 = vmatprep.subr.bf16.mxu0 0
        %1356 = vmatpush1.bf16.msra.mxu0 0
        %1357 = vmatprep.subr.bf16.mxu0 0
        %1358 = vmatpush1.bf16.msra.mxu0 0
        %1359 = vmatprep.subr.bf16.mxu0 0
        %1360 = vmatpush1.bf16.msra.mxu0 0
        %1361 = vmatprep.subr.bf16.mxu0 0
        %1362 = vmatpush1.bf16.msra.mxu0 0
        %1363 = vmatprep.subr.bf16.mxu0 0
        %1364 = vmatpush1.bf16.msra.mxu0 0
        %1365 = vmatprep.subr.bf16.mxu0 0
        %1366 = vmatpush1.bf16.msra.mxu0 %v1347
        %1367 = vmatprep.subr.bf16.mxu0 0
        %1368 = vmatpush1.bf16.msra.mxu0 %v1346
        %1369 = vmatprep.subr.bf16.mxu0 0
        %1370 = vmatpush2.bf16.msra.mxu0 0
        %1371 = vmatprep.subr.bf16.mxu0 0
        %1372 = vmatpush2.bf16.msra.mxu0 0
        %1373 = vmatprep.subr.bf16.mxu0 0
        %1374 = vmatpush2.bf16.msra.mxu0 0
        %1375 = vmatprep.subr.bf16.mxu0 0
        %1376 = vmatpush2.bf16.msra.mxu0 0
        %1377 = vmatprep.subr.bf16.mxu0 0
        %1378 = vmatpush2.bf16.msra.mxu0 0
        %1379 = vmatprep.subr.bf16.mxu0 0
        %1380 = vmatpush2.bf16.msra.mxu0 0
        %1381 = vmatprep.subr.bf16.mxu0 0
        %1382 = vmatpush2.bf16.msra.mxu0 0
        %1383 = vmatprep.subr.bf16.mxu0 0
        %1384 = vmatpush2.bf16.msra.mxu0 0
        %1385 = vmatprep.mubr.bf16.mxu0 0
        %1386 = vmatmul.mubr.bf16.gmra.mxu0 %v1351
        %v1387 = vpop.f32.mrf.mxu0
        %v1388 = vadd.f32 %v1336, %v1387
        %v1389 = vpop.f32.mrf.mxu0
        %v1390 = vpop.f32.mrf.mxu0
        %v1391 = vpop.f32.mrf.mxu0
        %1392 = vdwg.mxu0
        %v1393 = vadd.f32 %v767, %v1388
        %v1394 = vsel %vm792, %v1393, 0.0
        %1395 = vadd.xlane.f32.xlu0 %v1394
        %v1396 = vpop.xlane.xlu0 %1395
        %v1397 = vrcp.pop 32.0
        %v1398 = vmul.f32 %v1396, %v1397
        %v1399 = vsub.f32 %v1393, %v1398
        %v1400 = vmul.f32 %v1399, %v1399
        %v1401 = vsel %vm792, %v1400, 0.0
        %1402 = vadd.xlane.f32.xlu0 %v1401
        %v1403 = vpop.xlane.xlu0 %1402
        %v1404 = vmul.f32 %v1403, %v1397
        %v1405 = vadd.f32 %v1404, 1e-05
        %v1406 = vrsqrt.pop %v1405
        %v1407 = vmul.f32 %v1399, %v1406
        %v1408 = vld [vmem:[%s733] sm:$0x1]
        %v1410 = vlaneseq
        %v1411 = vshrl.u32 %v1410, 7
        %v1412 = vsub.s32 0, %v1411
        %v1413 = vrot.slane %v1408, %v1412
        %v1415 = vmul.f32 %v1407, %v1413
        %v1416 = vld [vmem:[%s736] sm:$0x1]
        %v1418 = vlaneseq
        %v1419 = vshrl.u32 %v1418, 7
        %v1420 = vsub.s32 0, %v1419
        %v1421 = vrot.slane %v1416, %v1420
        %v1423 = vadd.f32 %v1415, %v1421
        %v1424 = vpack.c.bf16 %v1423, %v1423
        %v1425 = vld [vmem:[%s741] sm:$0xf]
        %v1426 = vld [vmem:[%s741 + $0x4] sm:$0xf]
        %v1427 = vld [vmem:[%s741 + $0x8] sm:$0xf]
        %v1428 = vld [vmem:[%s741 + $0xc] sm:$0xf]
        %v1429 = vld [vmem:[%s744] sm:$0x1]
        %v1431 = vlaneseq
        %v1432 = vshrl.u32 %v1431, 7
        %v1433 = vsub.s32 0, %v1432
        %v1434 = vrot.slane %v1429, %v1433
        %v1440 = vunpack.c.l.b16 %v1425
        %v1441 = vunpack.c.l.b16 %v1426
        %v1442 = vunpack.c.l.b16 %v1427
        %v1443 = vunpack.c.l.b16 %v1428
        %v1444 = vpack.c.b16 %v1441, %v1440
        %v1445 = vpack.c.b16 %v1443, %v1442
        %v1449 = vsel %vm792, %v1424, 0
        %1451 = vmatprep.subr.bf16.mxu0 0
        %1452 = vmatpush1.bf16.msra.mxu0 0
        %1453 = vmatprep.subr.bf16.mxu0 0
        %1454 = vmatpush1.bf16.msra.mxu0 0
        %1455 = vmatprep.subr.bf16.mxu0 0
        %1456 = vmatpush1.bf16.msra.mxu0 0
        %1457 = vmatprep.subr.bf16.mxu0 0
        %1458 = vmatpush1.bf16.msra.mxu0 0
        %1459 = vmatprep.subr.bf16.mxu0 0
        %1460 = vmatpush1.bf16.msra.mxu0 0
        %1461 = vmatprep.subr.bf16.mxu0 0
        %1462 = vmatpush1.bf16.msra.mxu0 0
        %1463 = vmatprep.subr.bf16.mxu0 0
        %1464 = vmatpush1.bf16.msra.mxu0 %v1445
        %1465 = vmatprep.subr.bf16.mxu0 0
        %1466 = vmatpush1.bf16.msra.mxu0 %v1444
        %1467 = vmatprep.subr.bf16.mxu0 0
        %1468 = vmatpush2.bf16.msra.mxu0 0
        %1469 = vmatprep.subr.bf16.mxu0 0
        %1470 = vmatpush2.bf16.msra.mxu0 0
        %1471 = vmatprep.subr.bf16.mxu0 0
        %1472 = vmatpush2.bf16.msra.mxu0 0
        %1473 = vmatprep.subr.bf16.mxu0 0
        %1474 = vmatpush2.bf16.msra.mxu0 0
        %1475 = vmatprep.subr.bf16.mxu0 0
        %1476 = vmatpush2.bf16.msra.mxu0 0
        %1477 = vmatprep.subr.bf16.mxu0 0
        %1478 = vmatpush2.bf16.msra.mxu0 0
        %1479 = vmatprep.subr.bf16.mxu0 0
        %1480 = vmatpush2.bf16.msra.mxu0 0
        %1481 = vmatprep.subr.bf16.mxu0 0
        %1482 = vmatpush2.bf16.msra.mxu0 0
        %1483 = vmatprep.mubr.bf16.mxu0 0
        %1484 = vmatmul.mubr.bf16.gmra.mxu0 %v1449
        %v1485 = vpop.f32.mrf.mxu0
        %v1486 = vadd.f32 %v1434, %v1485
        %v1487 = vpop.f32.mrf.mxu0
        %v1488 = vpop.f32.mrf.mxu0
        %v1489 = vpop.f32.mrf.mxu0
        %1490 = vdwg.mxu0
        %v1491 = vmax.f32 %v1486, 0.0
        %v1492 = vpack.c.bf16 %v1491, %v1491
        %v1493 = vld [vmem:[%s749] sm:$0xf]
        %v1494 = vld [vmem:[%s749 + $0x4] sm:$0xf]
        %v1495 = vld [vmem:[%s749 + $0x8] sm:$0xf]
        %v1496 = vld [vmem:[%s749 + $0xc] sm:$0xf]
        %v1497 = vld [vmem:[%s749 + $0x10] sm:$0xf]
        %v1498 = vld [vmem:[%s749 + $0x14] sm:$0xf]
        %v1499 = vld [vmem:[%s749 + $0x18] sm:$0xf]
        %v1500 = vld [vmem:[%s749 + $0x1c] sm:$0xf]
        %v1501 = vld [vmem:[%s752] sm:$0x1]
        %v1503 = vlaneseq
        %v1504 = vshrl.u32 %v1503, 7
        %v1505 = vsub.s32 0, %v1504
        %v1506 = vrot.slane %v1501, %v1505
        %v1516 = vunpack.c.l.b16 %v1493
        %v1517 = vunpack.c.l.b16 %v1494
        %v1518 = vunpack.c.l.b16 %v1495
        %v1519 = vunpack.c.l.b16 %v1496
        %v1520 = vunpack.c.l.b16 %v1497
        %v1521 = vunpack.c.l.b16 %v1498
        %v1522 = vunpack.c.l.b16 %v1499
        %v1523 = vunpack.c.l.b16 %v1500
        %v1524 = vpack.c.b16 %v1517, %v1516
        %v1525 = vpack.c.b16 %v1519, %v1518
        %v1526 = vpack.c.b16 %v1521, %v1520
        %v1527 = vpack.c.b16 %v1523, %v1522
        %vm1532 = vcmask 523264
        %v1534 = vsel %vm1532, %v1492, 0
        %1536 = vmatprep.subr.bf16.mxu0 0
        %1537 = vmatpush1.bf16.msra.mxu0 0
        %1538 = vmatprep.subr.bf16.mxu0 0
        %1539 = vmatpush1.bf16.msra.mxu0 0
        %1540 = vmatprep.subr.bf16.mxu0 0
        %1541 = vmatpush1.bf16.msra.mxu0 0
        %1542 = vmatprep.subr.bf16.mxu0 0
        %1543 = vmatpush1.bf16.msra.mxu0 0
        %1544 = vmatprep.subr.bf16.mxu0 0
        %1545 = vmatpush1.bf16.msra.mxu0 %v1527
        %1546 = vmatprep.subr.bf16.mxu0 0
        %1547 = vmatpush1.bf16.msra.mxu0 %v1526
        %1548 = vmatprep.subr.bf16.mxu0 0
        %1549 = vmatpush1.bf16.msra.mxu0 %v1525
        %1550 = vmatprep.subr.bf16.mxu0 0
        %1551 = vmatpush1.bf16.msra.mxu0 %v1524
        %1552 = vmatprep.subr.bf16.mxu0 0
        %1553 = vmatpush2.bf16.msra.mxu0 0
        %1554 = vmatprep.subr.bf16.mxu0 0
        %1555 = vmatpush2.bf16.msra.mxu0 0
        %1556 = vmatprep.subr.bf16.mxu0 0
        %1557 = vmatpush2.bf16.msra.mxu0 0
        %1558 = vmatprep.subr.bf16.mxu0 0
        %1559 = vmatpush2.bf16.msra.mxu0 0
        %1560 = vmatprep.subr.bf16.mxu0 0
        %1561 = vmatpush2.bf16.msra.mxu0 0
        %1562 = vmatprep.subr.bf16.mxu0 0
        %1563 = vmatpush2.bf16.msra.mxu0 0
        %1564 = vmatprep.subr.bf16.mxu0 0
        %1565 = vmatpush2.bf16.msra.mxu0 0
        %1566 = vmatprep.subr.bf16.mxu0 0
        %1567 = vmatpush2.bf16.msra.mxu0 0
        %1568 = vmatprep.mubr.bf16.mxu0 0
        %1569 = vmatmul.mubr.bf16.gmra.mxu0 %v1534
        %v1570 = vpop.f32.mrf.mxu0
        %v1571 = vadd.f32 %v1506, %v1570
        %v1572 = vpop.f32.mrf.mxu0
        %v1573 = vpop.f32.mrf.mxu0
        %v1574 = vpop.f32.mrf.mxu0
        %1575 = vdwg.mxu0
        %v1576 = vadd.f32 %v1423, %v1571
        %v1577 = vsel %vm792, %v1576, 0.0
        %1578 = vadd.xlane.f32.xlu0 %v1577
        %v1579 = vpop.xlane.xlu0 %1578
        %v1580 = vmul.f32 %v1579, %v1397
        %v1581 = vsub.f32 %v1576, %v1580
        %v1582 = vmul.f32 %v1581, %v1581
        %v1583 = vsel %vm792, %v1582, 0.0
        %1584 = vadd.xlane.f32.xlu0 %v1583
        %v1585 = vpop.xlane.xlu0 %1584
        %v1586 = vmul.f32 %v1585, %v1397
        %v1587 = vadd.f32 %v1586, 1e-05
        %v1588 = vrsqrt.pop %v1587
        %v1589 = vmul.f32 %v1581, %v1588
        %v1590 = vld [vmem:[%s755] sm:$0x1]
        %v1592 = vlaneseq
        %v1593 = vshrl.u32 %v1592, 7
        %v1594 = vsub.s32 0, %v1593
        %v1595 = vrot.slane %v1590, %v1594
        %v1597 = vmul.f32 %v1589, %v1595
        %v1598 = vld [vmem:[%s758] sm:$0x1]
        %v1600 = vlaneseq
        %v1601 = vshrl.u32 %v1600, 7
        %v1602 = vsub.s32 0, %v1601
        %v1603 = vrot.slane %v1598, %v1602
        %v1605 = vadd.f32 %v1597, %v1603
        %1606 = vst.msk [vmem:[%s707] sm:$0xff] %vm792, %v1605
        %s1607 = sand.u32 %s423, 1
        %s1608 = scalar_lea.sflag [#allocation4], %s1607
        %s1609 = sand.u32 %s423, 1
        %s1610 = smul.addr %s1609, 8
        %s1611 = scalar_lea.vmem [#allocation7], %s1610
        %s1612 = sand.u32 %s449, 1
        %s1613 = scalar_lea.sflag [#allocation9], %s1612
        %s1614 = sand.u32 %s449, 1
        %s1615 = smul.addr %s1614, 16
        %s1616 = scalar_lea.vmem [#allocation8], %s1615
        // Predicated region
        $region93: #{tpu_custom_call.1} parent=75 // pred_check
          %p1617 = pneg %p433
        $region94: #{tpu_custom_call.1} parent=75 // pred_check_branch
          %1619 = sbr.rel (%p1617) target = $region96
        $region95: #{tpu_custom_call.1} parent=75 // pred_region
          %s1621 = ssub.s32 128, 128
          %1622 = vsyncadd %s1608, %s1621
          %s1623 = smul.addr %s43, 128
          %s1624 = scalar_lea.hbm %s14, %s1623
          %s1626 = sshll.u32 %s1611, 4
          %s1627 = int_to_ptr.vmem [resolvable:$true] %s1626
          %1629 = dma.vmem_to_hbm [thread:$0]  %s1627, 128, %s1624, %s1608
        $region96: #{tpu_custom_call.1} parent=75 // pred_fallthru
          _
        // Predicated region
        $region97: #{tpu_custom_call.1} parent=75 // pred_check
          %p1630 = pneg %p459
        $region98: #{tpu_custom_call.1} parent=75 // pred_check_branch
          %1632 = sbr.rel (%p1630) target = $region100
        $region99: #{tpu_custom_call.1} parent=75 // pred_region
          %s1634 = ssub.s32 256, 256
          %1635 = vsyncadd %s1613, %s1634
          %s1636 = smul.addr %s43, 4
          %s1637 = smul.addr %s1636, 64
          %s1638 = scalar_lea.hbm %s15, %s1637
          %s1639 = sshll.u32 %s1616, 4
          %s1640 = int_to_ptr.vmem [resolvable:$true] %s1639
          %1645 = dma.vmem_to_hbm [thread:$0]  %s1640, 256, %s1638, %s1613, 64, 64, 4
        $region100: #{tpu_custom_call.1} parent=75 // pred_fallthru
          _
      $region76: #{tpu_custom_call.1} parent=5 // pred_fallthru
        _
      %p1646 = scmp.le.s32.totalorder 2, %s34
      // Predicated region
      $region101: #{tpu_custom_call.1} parent=5 // pred_check
        %p1647 = pneg %p1646
      $region102: #{tpu_custom_call.1} parent=5 // pred_check_branch
        %1649 = sbr.rel (%p1647) target = $region104
      $region103: #{tpu_custom_call.1} parent=5 // pred_region
        %s1650 = ssub.s32 %s34, 2
        // Predicated region
        $region105: #{tpu_custom_call.1} parent=103 // pred_check
          %p1651 = pneg %p439
        $region106: #{tpu_custom_call.1} parent=103 // pred_check_branch
          %1653 = sbr.rel (%p1651) target = $region108
        $region107: #{tpu_custom_call.1} parent=103 // pred_region
          %s1654 = sand.u32 %s424, 1
          %s1655 = scalar_lea.sflag [#allocation4], %s1654
          %s1656 = sand.u32 %s424, 1
          %s1657 = smul.addr %s1656, 8
          %s1658 = scalar_lea.vmem [#allocation7], %s1657
          %1659 = dma.done %s1655, 128
        $region108: #{tpu_custom_call.1} parent=103 // pred_fallthru
          _
        // Predicated region
        $region109: #{tpu_custom_call.1} parent=103 // pred_check
          %p1660 = pneg %p465
        $region110: #{tpu_custom_call.1} parent=103 // pred_check_branch
          %1662 = sbr.rel (%p1660) target = $region112
        $region111: #{tpu_custom_call.1} parent=103 // pred_region
          %s1663 = sand.u32 %s450, 1
          %s1664 = scalar_lea.sflag [#allocation9], %s1663
          %s1665 = sand.u32 %s450, 1
          %s1666 = smul.addr %s1665, 16
          %s1667 = scalar_lea.vmem [#allocation8], %s1666
          %1668 = dma.done %s1664, 256
        $region112: #{tpu_custom_call.1} parent=103 // pred_fallthru
          _
      $region104: #{tpu_custom_call.1} parent=5 // pred_fallthru
        _
    $region6: #{tpu_custom_call.1} parent=1 // loop_footer
      %s38 = sadd.s32 1, %s34
    $region7: #{tpu_custom_call.1} parent=1 // loop_footer_branch
      %33 = sbr.rel target = $region3
    $region8: #{tpu_custom_call.1} parent=1 // loop_exit
      _
    %1669 = vsyncpa [#allocation3], 1
    %s1670 = scalar_lea.sflag [#allocation3], 1
    %1671 = vsyncpa %s1670, 1
    %1672 = vsyncpa [#allocation6], 1
    %s1673 = scalar_lea.sflag [#allocation6], 1
    %1674 = vsyncpa %s1673, 1
    %1675 = vsyncpa [#allocation4], 1
    %s1676 = scalar_lea.sflag [#allocation4], 1
    %1677 = vsyncpa %s1676, 1
    %1678 = vsyncpa [#allocation9], 1
    %s1679 = scalar_lea.sflag [#allocation9], 1
    %1680 = vsyncpa %s1679, 1

</llo_original>
